<compile_context>
chip_gen: v7x
topology: tpu7x:2x2x1
jax: 0.10.0
libtpu: 0.0.40
codegen_flags: <defaults>
</compile_context>

<pallas_src>
import math
import functools

import jax
import jax.numpy as jnp
from jax.experimental import pallas as pl
from jax.experimental.pallas import tpu as pltpu


def _supports_pipeline_mode() -> bool:
    """Narrow capability probe for BlockSpec(..., pipeline_mode=pl.Buffered(n))."""
    if not hasattr(pl, "Buffered"):
        return False
    try:
        pl.BlockSpec((8, 128), lambda i, j: (0, 0), pipeline_mode=pl.Buffered(1))
    except (TypeError, ValueError):
        return False
    return True


def _device_tuning():
    """Per-generation knobs: softmax dtype, VMEM cap, preferred q-tile sizes."""
    kind = ""
    devs = jax.devices()
    if devs:
        kind = (getattr(devs[0], "device_kind", "") or "").lower()
    is_v5e = ("v5 lite" in kind) or ("v5e" in kind) or ("v5lite" in kind)
    is_v7 = "v7" in kind
    # v6e/v7x have bf16 VPU/EUP (fast exp path); v5e does not -> f32 softmax.
    softmax_dtype = jnp.float32 if is_v5e else jnp.bfloat16
    # v7x: 64 MiB physical VMEM per TensorCore; v5e/v6e: 128 MiB.
    vmem_cap = (48 << 20) if is_v7 else (100 << 20)
    # v5e MXU is 4x128x128: 128 query rows already saturate it and halve the
    # (block_q, S) live temporaries against its 16 MiB scoped-VMEM default.
    block_q_prefs = ((128, 256, 64, 32, 16, 8) if is_v5e
                     else (256, 128, 64, 32, 16, 8))
    return softmax_dtype, vmem_cap, block_q_prefs


def _vmem_limit_bytes(S, D, H, d_k, block_q, single_buffered, cap):
    """Explicit scoped-VMEM request from the kernel's resident set (+headroom)."""
    bf = 2
    n_buf = 1 if single_buffered else 2
    lane_dk = max(d_k, 128)                               # lane padding of d_k
    est = 0
    est += n_buf * 2 * S * D * bf                         # raw K, V blocks
    est += (2 * H * S * lane_dk + H * block_q * lane_dk) * bf   # K/V/Q proj scratch
    est += n_buf * (3 * H * D * lane_dk + H * d_k * max(D, 128)) * bf  # weights
    est += 2 * 2 * block_q * D * bf                       # q in + out blocks
    est += 2 * block_q * S * bf                           # bias block
    est += H * block_q * S * (4 + 2 + 2)                  # scores f32 + exp/probs
    est += 2 * block_q * max(D, 128) * 4                  # output accumulator
    est = int(est * 1.25) + (2 << 20)                     # pipelining headroom
    return max(min(est, cap), 32 << 20)


def _mha_kernel(q_ref, k_ref, v_ref, bias_ref,
                wqTh_ref, wkTh_ref, wvTh_ref, woTh_ref,
                out_ref,
                kproj_ref, vproj_ref, qproj_ref,
                *, num_heads: int, softmax_dtype):
    """One grid step == (batch element b, query tile qi)."""
    qi = pl.program_id(1)

    # --- K / V projections: once per batch element (qi == 0), written directly
    # in head-major (H, S, d_k) scratch (weights pre-split per head in the
    # wrapper), reused by every query tile of this batch element. ---
    @pl.when(qi == 0)
    def _():
        k_in = k_ref[0]
        v_in = v_ref[0]
        for h in range(num_heads):        # static unroll, one MXU matmul each
            kproj_ref[h] = jnp.dot(
                k_in, wkTh_ref[h],
                preferred_element_type=jnp.float32).astype(kproj_ref.dtype)
            vproj_ref[h] = jnp.dot(
                v_in, wvTh_ref[h],
                preferred_element_type=jnp.float32).astype(vproj_ref.dtype)

    # --- Q projection for this query tile, head-major (H, tq, d_k).
    # The 1/sqrt(d_k) scale is already folded into wqTh by the wrapper. ---
    x_q = q_ref[0]
    for h in range(num_heads):
        qproj_ref[h] = jnp.dot(
            x_q, wqTh_ref[h],
            preferred_element_type=jnp.float32).astype(qproj_ref.dtype)

    qh = qproj_ref[...]                                   # (H, tq, d_k) bf16
    kh = kproj_ref[...]                                   # (H, S,  d_k) bf16
    vh = vproj_ref[...]                                   # (H, S,  d_k) bf16

    # --- Attention scores for all heads in ONE batched dot_general
    # ('hqd,hkd->hqk'): no K transpose, lane-dense (.., S) score tiles. ---
    scores = jax.lax.dot_general(
        qh, kh, (((2,), (2,)), ((0,), (0,))),
        preferred_element_type=jnp.float32)                # (H, tq, S) f32

    # --- Precomputed additive mask bias (bf16 in HBM: half the DMA of int32,
    # no compare/select here), shared by all heads. ---
    scores = scores + bias_ref[0].astype(jnp.float32)[None, :, :]

    # --- Numerically-stable softmax: max/sum reductions in f32; exp and the
    # normalize multiply in bf16 on v6e/v7x (bf16 EUP/VPU), f32 on v5e. ---
    m = jnp.max(scores, axis=-1, keepdims=True)
    e = jnp.exp((scores - m).astype(softmax_dtype))
    s = jnp.sum(e.astype(jnp.float32), axis=-1, keepdims=True)
    inv = pl.reciprocal(s, approx=True)                    # EUP slot, no divide
    probs = (e * inv.astype(softmax_dtype)).astype(jnp.bfloat16)

    # --- Per-head context, batched ('hqk,hkd->hqd'). ---
    ctx = jax.lax.dot_general(
        probs, vh, (((2,), (1,)), ((0,), (0,))),
        preferred_element_type=jnp.float32)                # (H, tq, d_k) f32
    ctx = ctx.astype(jnp.bfloat16)

    # --- Output projection fused with the head merge: accumulate per-head
    # (tq, d_k) @ (d_k, D) into one lane-dense (tq, D) result. No concat, no
    # ctx slab in VMEM, no masked partial stores at sub-128-lane offsets. ---
    out = jnp.dot(ctx[0], woTh_ref[0], preferred_element_type=jnp.float32)
    for h in range(1, num_heads):
        out = out + jnp.dot(ctx[h], woTh_ref[h],
                            preferred_element_type=jnp.float32)
    out_ref[0] = out.astype(out_ref.dtype)


def _build_mha_call(B, S, D, num_heads, d_k, block_q, mask_batch, out_dtype,
                    softmax_dtype, vmem_limit, use_buffered):
    kernel = functools.partial(_mha_kernel, num_heads=num_heads,
                               softmax_dtype=softmax_dtype)

    def spec(block_shape, index_map, single_buffer=False):
        if single_buffer and use_buffered:
            return pl.BlockSpec(block_shape, index_map,
                                pipeline_mode=pl.Buffered(1))
        return pl.BlockSpec(block_shape, index_map)

    q_spec = spec((1, block_q, D), lambda b, qi: (b, qi, 0))
    # K/V block index is constant over qi and only read at qi == 0:
    # single-buffer it (one exposed DMA per batch element, amortized over
    # S/block_q query tiles) to halve the raw K/V VMEM footprint.
    k_spec = spec((1, S, D), lambda b, qi: (b, 0, 0), single_buffer=True)
    v_spec = spec((1, S, D), lambda b, qi: (b, 0, 0), single_buffer=True)
    if mask_batch == 1:   # bias shared across batch -> constant block index
        bias_spec = spec((1, block_q, S), lambda b, qi: (0, qi, 0))
    else:
        bias_spec = spec((1, block_q, S), lambda b, qi: (b, qi, 0))
    # Grid-invariant per-head weight stacks: single-buffered.
    wq_spec = spec((num_heads, D, d_k), lambda b, qi: (0, 0, 0), single_buffer=True)
    wk_spec = spec((num_heads, D, d_k), lambda b, qi: (0, 0, 0), single_buffer=True)
    wv_spec = spec((num_heads, D, d_k), lambda b, qi: (0, 0, 0), single_buffer=True)
    wo_spec = spec((num_heads, d_k, D), lambda b, qi: (0, 0, 0), single_buffer=True)

    return pl.pallas_call(
        kernel,
        out_shape=jax.ShapeDtypeStruct((B, S, D), out_dtype),
        grid_spec=pltpu.PrefetchScalarGridSpec(
            num_scalar_prefetch=0,
            grid=(B, S // block_q),
            in_specs=[q_spec, k_spec, v_spec, bias_spec,
                      wq_spec, wk_spec, wv_spec, wo_spec],
            out_specs=pl.BlockSpec((1, block_q, D), lambda b, qi: (b, qi, 0)),
            scratch_shapes=[
                pltpu.VMEM((num_heads, S, d_k), jnp.bfloat16),       # K proj
                pltpu.VMEM((num_heads, S, d_k), jnp.bfloat16),       # V proj
                pltpu.VMEM((num_heads, block_q, d_k), jnp.bfloat16), # Q proj
            ],
        ),
        compiler_params=pltpu.CompilerParams(
            # Batch axis: megacore-parallel. q-tile axis must stay sequential
            # so the per-batch K/V projection scratch is reused across tiles.
            dimension_semantics=("parallel", "arbitrary"),
            vmem_limit_bytes=int(vmem_limit)),
    )


def multi_head_attention(q, k, v, mask, wq, wk, wv, wo, *,
                         num_heads: int, block_q: int | None = None):
    """q, k, v: (B, S, D); mask: (B|1, 1, S|1, S) or None; w*: (D, D) Linear weights."""
    B, S, D = q.shape
    assert D % num_heads == 0, "d_model is not divisible by h"
    d_k = D // num_heads

    softmax_dtype, vmem_cap, block_q_prefs = _device_tuning()
    use_buffered = _supports_pipeline_mode()

    compute = jnp.bfloat16
    scale = 1.0 / math.sqrt(d_k)

    # --- One-time wrapper-side preprocessing (XLA, not per grid step):
    # per-head weight stacks, 1/sqrt(d_k) folded into Q, bf16 MXU operands. ---
    def split_in(w, s=1.0):
        # x @ W.T, head h == x @ W.T[:, h*d_k:(h+1)*d_k]  ->  (H, D, d_k)
        wT = (w.T * s).astype(compute)
        return wT.reshape(D, num_heads, d_k).transpose(1, 0, 2)

    wqTh = split_in(wq, scale)
    wkTh = split_in(wk)
    wvTh = split_in(wv)
    # ctx_concat @ Wo.T, head-h row block of Wo.T  ->  (H, d_k, D)
    woTh = wo.T.astype(compute).reshape(num_heads, d_k, D)

    # Mask -> additive bf16 bias (Bm, S, S): no int32 mask DMA and no in-kernel
    # compare/select. exp(x - 1e9 - m) underflows to exactly 0, matching
    # masked_fill_(mask == 0, -1e9) for any row with >= 1 valid key.
    if mask is None:
        bias = jnp.zeros((1, S, S), dtype=compute)
        mask_batch = 1
    else:
        assert mask.ndim == 4 and mask.shape[1] == 1, \
            "expected mask of shape (B|1, 1, S|1, S)"
        mask_batch = mask.shape[0]
        bias = jnp.where(mask[:, 0] == 0, jnp.float32(-1e9), jnp.float32(0.0))
        bias = jnp.broadcast_to(bias, (mask_batch, S, S)).astype(compute)

    q_c = q.astype(compute)
    k_c = k.astype(compute)
    v_c = v.astype(compute)

    # Query-tile size: generation-aware preference list, multiple of 8
    # (sublane), dividing S; else fall back to the full sequence.
    if block_q is None:
        block_q = next((c for c in block_q_prefs if c <= S and S % c == 0), S)
    if S % block_q != 0 or (block_q != S and block_q % 8 != 0):
        block_q = S

    vmem_limit = _vmem_limit_bytes(S, D, num_heads, d_k, block_q,
                                   use_buffered, vmem_cap)

    call = _build_mha_call(B, S, D, num_heads, d_k, block_q, mask_batch,
                           q.dtype, softmax_dtype, vmem_limit, use_buffered)
    return call(q_c, k_c, v_c, bias, wqTh, wkTh, wvTh, woTh)


def _reference(q, k, v, mask, wq, wk, wv, wo, *, num_heads: int):
    """Plain-JAX f32 reference mirroring the PyTorch module (eval mode)."""
    B, S, D = q.shape
    d_k = D // num_heads

    def split_heads(x):
        return x.reshape(B, S, num_heads, d_k).transpose(0, 2, 1, 3)

    Q = split_heads(q @ wq.T)
    K = split_heads(k @ wk.T)
    V = split_heads(v @ wv.T)
    scores = jnp.einsum("bhqd,bhkd->bhqk", Q, K) / math.sqrt(d_k)
    if mask is not None:
        scores = jnp.where(mask == 0, -1.0e9, scores)
    probs = jax.nn.softmax(scores, axis=-1)
    ctx = jnp.einsum("bhqk,bhkd->bhqd", probs, V)
    ctx = ctx.transpose(0, 2, 1, 3).reshape(B, S, D)
    return ctx @ wo.T


if __name__ == "__main__":
    B, S, D, H = 2, 8, 32, 4

    key = jax.random.PRNGKey(0)
    kq, kk, kv, kwq, kwk, kwv, kwo = jax.random.split(key, 7)

    q = jax.random.normal(kq, (B, S, D), dtype=jnp.float32)
    k = jax.random.normal(kk, (B, S, D), dtype=jnp.float32)
    v = jax.random.normal(kv, (B, S, D), dtype=jnp.float32)

    # nn.Linear(d_model, d_model, bias=False) weights, shape (D, D)
    wscale = 1.0 / math.sqrt(D)
    wq = jax.random.uniform(kwq, (D, D), jnp.float32, -wscale, wscale)
    wk = jax.random.uniform(kwk, (D, D), jnp.float32, -wscale, wscale)
    wv = jax.random.uniform(kwv, (D, D), jnp.float32, -wscale, wscale)
    wo = jax.random.uniform(kwo, (D, D), jnp.float32, -wscale, wscale)

    # Causal mask shared across batch and heads: (1, 1, S, S), 1 = keep.
    causal = jnp.tril(jnp.ones((S, S), dtype=jnp.int32))
    mask = causal[None, None]

    out = multi_head_attention(q, k, v, mask, wq, wk, wv, wo, num_heads=H)
    out = jax.block_until_ready(out)

    ref = _reference(q, k, v, mask, wq, wk, wv, wo, num_heads=H)
    assert out.shape == (B, S, D)
    max_err = float(jnp.max(jnp.abs(out - ref)))
    # bf16 MXU operands + bf16 softmax + approx reciprocal => loose tolerance.
    assert jnp.allclose(out, ref, atol=5e-2, rtol=5e-2), (
        f"mismatch vs reference (max abs err {max_err})")

    print("KERNEL_OK")
</pallas_src>

<mosaic_0001>
module attributes {stable_mosaic.version = 11 : i64} {
  func.func @_mha_kernel(%arg0: i32, %arg1: i32, %arg2: memref<1x8x32xbf16, #tpu.memory_space<vmem>>, %arg3: memref<1x8x32xbf16, #tpu.memory_space<vmem>>, %arg4: memref<1x8x32xbf16, #tpu.memory_space<vmem>>, %arg5: memref<1x8x8xbf16, #tpu.memory_space<vmem>>, %arg6: memref<4x32x8xbf16, #tpu.memory_space<vmem>>, %arg7: memref<4x32x8xbf16, #tpu.memory_space<vmem>>, %arg8: memref<4x32x8xbf16, #tpu.memory_space<vmem>>, %arg9: memref<4x8x32xbf16, #tpu.memory_space<vmem>>, %arg10: memref<1x8x32xf32, #tpu.memory_space<vmem>>, %arg11: memref<4x8x8xbf16, #tpu.memory_space<vmem>>, %arg12: memref<4x8x8xbf16, #tpu.memory_space<vmem>>, %arg13: memref<4x8x8xbf16, #tpu.memory_space<vmem>>) attributes {dimension_semantics = [#tpu.dimension_semantics<parallel>, #tpu.dimension_semantics<arbitrary>], iteration_bounds = array<i64: 2, 1>, scalar_prefetch = 0 : i64, scratch_operands = 3 : i64, tpu.core_type = #tpu.core_type<tc>, window_params = [{transform_indices = @transform_0, window_bounds = array<i64: 1, 8, 32>}, {pipeline_mode = #tpu.pipeline_mode<synchronous>, transform_indices = @transform_1, window_bounds = array<i64: 1, 8, 32>}, {pipeline_mode = #tpu.pipeline_mode<synchronous>, transform_indices = @transform_2, window_bounds = array<i64: 1, 8, 32>}, {transform_indices = @transform_3, window_bounds = array<i64: 1, 8, 8>}, {pipeline_mode = #tpu.pipeline_mode<synchronous>, transform_indices = @transform_4, window_bounds = array<i64: 4, 32, 8>}, {pipeline_mode = #tpu.pipeline_mode<synchronous>, transform_indices = @transform_5, window_bounds = array<i64: 4, 32, 8>}, {pipeline_mode = #tpu.pipeline_mode<synchronous>, transform_indices = @transform_6, window_bounds = array<i64: 4, 32, 8>}, {pipeline_mode = #tpu.pipeline_mode<synchronous>, transform_indices = @transform_7, window_bounds = array<i64: 4, 8, 32>}, {transform_indices = @transform_8, window_bounds = array<i64: 1, 8, 32>}]} {
    %c0_i32 = arith.constant 0 : i32
    %0 = arith.cmpi eq, %arg1, %c0_i32 : i32
    %1 = arith.extui %0 : i1 to i32
    %c0_i32_0 = arith.constant 0 : i32
    %2 = arith.cmpi ne, %1, %c0_i32_0 : i32
    scf.if %2 {
      %c0_62 = arith.constant 0 : index
      %c0_63 = arith.constant 0 : index
      %c0_64 = arith.constant 0 : index
      %84 = vector.load %arg3[%c0_62, %c0_63, %c0_64] : memref<1x8x32xbf16, #tpu.memory_space<vmem>>, vector<1x8x32xbf16>
      %85 = vector.shape_cast %84 : vector<1x8x32xbf16> to vector<8x32xbf16>
      %c0_65 = arith.constant 0 : index
      %c0_66 = arith.constant 0 : index
      %c0_67 = arith.constant 0 : index
      %86 = vector.load %arg4[%c0_65, %c0_66, %c0_67] : memref<1x8x32xbf16, #tpu.memory_space<vmem>>, vector<1x8x32xbf16>
      %87 = vector.shape_cast %86 : vector<1x8x32xbf16> to vector<8x32xbf16>
      %c0_68 = arith.constant 0 : index
      %c0_69 = arith.constant 0 : index
      %c0_70 = arith.constant 0 : index
      %88 = vector.load %arg7[%c0_68, %c0_69, %c0_70] : memref<4x32x8xbf16, #tpu.memory_space<vmem>>, vector<1x32x8xbf16>
      %89 = vector.shape_cast %88 : vector<1x32x8xbf16> to vector<32x8xbf16>
      %cst_71 = arith.constant dense<0.000000e+00> : vector<8x8xf32>
      %90 = tpu.matmul %85, %89, %cst_71 {dimension_numbers = #tpu.dot_dimension_numbers<[1], [0], [0], [1], [0, 0, 1, 1], [], []>} : vector<8x32xbf16>, vector<32x8xbf16>, vector<8x8xf32> -> vector<8x8xf32>
      %91 = arith.truncf %90 : vector<8x8xf32> to vector<8x8xbf16>
      %c0_72 = arith.constant 0 : index
      %c0_73 = arith.constant 0 : index
      %c0_74 = arith.constant 0 : index
      %92 = vector.load %arg11[%c0_72, %c0_73, %c0_74] : memref<4x8x8xbf16, #tpu.memory_space<vmem>>, vector<1x8x8xbf16>
      %93 = vector.shape_cast %92 : vector<1x8x8xbf16> to vector<8x8xbf16>
      %94 = vector.shape_cast %91 : vector<8x8xbf16> to vector<1x8x8xbf16>
      tpu.vector_store %arg11[%c0_72, %c0_73, %c0_74], %94 {strides = array<i32>} : memref<4x8x8xbf16, #tpu.memory_space<vmem>>, vector<1x8x8xbf16>,
      %c0_75 = arith.constant 0 : index
      %c0_76 = arith.constant 0 : index
      %c0_77 = arith.constant 0 : index
      %95 = vector.load %arg8[%c0_75, %c0_76, %c0_77] : memref<4x32x8xbf16, #tpu.memory_space<vmem>>, vector<1x32x8xbf16>
      %96 = vector.shape_cast %95 : vector<1x32x8xbf16> to vector<32x8xbf16>
      %cst_78 = arith.constant dense<0.000000e+00> : vector<8x8xf32>
      %97 = tpu.matmul %87, %96, %cst_78 {dimension_numbers = #tpu.dot_dimension_numbers<[1], [0], [0], [1], [0, 0, 1, 1], [], []>} : vector<8x32xbf16>, vector<32x8xbf16>, vector<8x8xf32> -> vector<8x8xf32>
      %98 = arith.truncf %97 : vector<8x8xf32> to vector<8x8xbf16>
      %c0_79 = arith.constant 0 : index
      %c0_80 = arith.constant 0 : index
      %c0_81 = arith.constant 0 : index
      %99 = vector.load %arg12[%c0_79, %c0_80, %c0_81] : memref<4x8x8xbf16, #tpu.memory_space<vmem>>, vector<1x8x8xbf16>
      %100 = vector.shape_cast %99 : vector<1x8x8xbf16> to vector<8x8xbf16>
      %101 = vector.shape_cast %98 : vector<8x8xbf16> to vector<1x8x8xbf16>
      tpu.vector_store %arg12[%c0_79, %c0_80, %c0_81], %101 {strides = array<i32>} : memref<4x8x8xbf16, #tpu.memory_space<vmem>>, vector<1x8x8xbf16>,
      %c1_82 = arith.constant 1 : index
      %c0_83 = arith.constant 0 : index
      %c0_84 = arith.constant 0 : index
      %102 = vector.load %arg7[%c1_82, %c0_83, %c0_84] : memref<4x32x8xbf16, #tpu.memory_space<vmem>>, vector<1x32x8xbf16>
      %103 = vector.shape_cast %102 : vector<1x32x8xbf16> to vector<32x8xbf16>
      %cst_85 = arith.constant dense<0.000000e+00> : vector<8x8xf32>
      %104 = tpu.matmul %85, %103, %cst_85 {dimension_numbers = #tpu.dot_dimension_numbers<[1], [0], [0], [1], [0, 0, 1, 1], [], []>} : vector<8x32xbf16>, vector<32x8xbf16>, vector<8x8xf32> -> vector<8x8xf32>
      %105 = arith.truncf %104 : vector<8x8xf32> to vector<8x8xbf16>
      %c1_86 = arith.constant 1 : index
      %c0_87 = arith.constant 0 : index
      %c0_88 = arith.constant 0 : index
      %106 = vector.load %arg11[%c1_86, %c0_87, %c0_88] : memref<4x8x8xbf16, #tpu.memory_space<vmem>>, vector<1x8x8xbf16>
      %107 = vector.shape_cast %106 : vector<1x8x8xbf16> to vector<8x8xbf16>
      %108 = vector.shape_cast %105 : vector<8x8xbf16> to vector<1x8x8xbf16>
      tpu.vector_store %arg11[%c1_86, %c0_87, %c0_88], %108 {strides = array<i32>} : memref<4x8x8xbf16, #tpu.memory_space<vmem>>, vector<1x8x8xbf16>,
      %c1_89 = arith.constant 1 : index
      %c0_90 = arith.constant 0 : index
      %c0_91 = arith.constant 0 : index
      %109 = vector.load %arg8[%c1_89, %c0_90, %c0_91] : memref<4x32x8xbf16, #tpu.memory_space<vmem>>, vector<1x32x8xbf16>
      %110 = vector.shape_cast %109 : vector<1x32x8xbf16> to vector<32x8xbf16>
      %cst_92 = arith.constant dense<0.000000e+00> : vector<8x8xf32>
      %111 = tpu.matmul %87, %110, %cst_92 {dimension_numbers = #tpu.dot_dimension_numbers<[1], [0], [0], [1], [0, 0, 1, 1], [], []>} : vector<8x32xbf16>, vector<32x8xbf16>, vector<8x8xf32> -> vector<8x8xf32>
      %112 = arith.truncf %111 : vector<8x8xf32> to vector<8x8xbf16>
      %c1_93 = arith.constant 1 : index
      %c0_94 = arith.constant 0 : index
      %c0_95 = arith.constant 0 : index
      %113 = vector.load %arg12[%c1_93, %c0_94, %c0_95] : memref<4x8x8xbf16, #tpu.memory_space<vmem>>, vector<1x8x8xbf16>
      %114 = vector.shape_cast %113 : vector<1x8x8xbf16> to vector<8x8xbf16>
      %115 = vector.shape_cast %112 : vector<8x8xbf16> to vector<1x8x8xbf16>
      tpu.vector_store %arg12[%c1_93, %c0_94, %c0_95], %115 {strides = array<i32>} : memref<4x8x8xbf16, #tpu.memory_space<vmem>>, vector<1x8x8xbf16>,
      %c2_96 = arith.constant 2 : index
      %c0_97 = arith.constant 0 : index
      %c0_98 = arith.constant 0 : index
      %116 = vector.load %arg7[%c2_96, %c0_97, %c0_98] : memref<4x32x8xbf16, #tpu.memory_space<vmem>>, vector<1x32x8xbf16>
      %117 = vector.shape_cast %116 : vector<1x32x8xbf16> to vector<32x8xbf16>
      %cst_99 = arith.constant dense<0.000000e+00> : vector<8x8xf32>
      %118 = tpu.matmul %85, %117, %cst_99 {dimension_numbers = #tpu.dot_dimension_numbers<[1], [0], [0], [1], [0, 0, 1, 1], [], []>} : vector<8x32xbf16>, vector<32x8xbf16>, vector<8x8xf32> -> vector<8x8xf32>
      %119 = arith.truncf %118 : vector<8x8xf32> to vector<8x8xbf16>
      %c2_100 = arith.constant 2 : index
      %c0_101 = arith.constant 0 : index
      %c0_102 = arith.constant 0 : index
      %120 = vector.load %arg11[%c2_100, %c0_101, %c0_102] : memref<4x8x8xbf16, #tpu.memory_space<vmem>>, vector<1x8x8xbf16>
      %121 = vector.shape_cast %120 : vector<1x8x8xbf16> to vector<8x8xbf16>
      %122 = vector.shape_cast %119 : vector<8x8xbf16> to vector<1x8x8xbf16>
      tpu.vector_store %arg11[%c2_100, %c0_101, %c0_102], %122 {strides = array<i32>} : memref<4x8x8xbf16, #tpu.memory_space<vmem>>, vector<1x8x8xbf16>,
      %c2_103 = arith.constant 2 : index
      %c0_104 = arith.constant 0 : index
      %c0_105 = arith.constant 0 : index
      %123 = vector.load %arg8[%c2_103, %c0_104, %c0_105] : memref<4x32x8xbf16, #tpu.memory_space<vmem>>, vector<1x32x8xbf16>
      %124 = vector.shape_cast %123 : vector<1x32x8xbf16> to vector<32x8xbf16>
      %cst_106 = arith.constant dense<0.000000e+00> : vector<8x8xf32>
      %125 = tpu.matmul %87, %124, %cst_106 {dimension_numbers = #tpu.dot_dimension_numbers<[1], [0], [0], [1], [0, 0, 1, 1], [], []>} : vector<8x32xbf16>, vector<32x8xbf16>, vector<8x8xf32> -> vector<8x8xf32>
      %126 = arith.truncf %125 : vector<8x8xf32> to vector<8x8xbf16>
      %c2_107 = arith.constant 2 : index
      %c0_108 = arith.constant 0 : index
      %c0_109 = arith.constant 0 : index
      %127 = vector.load %arg12[%c2_107, %c0_108, %c0_109] : memref<4x8x8xbf16, #tpu.memory_space<vmem>>, vector<1x8x8xbf16>
      %128 = vector.shape_cast %127 : vector<1x8x8xbf16> to vector<8x8xbf16>
      %129 = vector.shape_cast %126 : vector<8x8xbf16> to vector<1x8x8xbf16>
      tpu.vector_store %arg12[%c2_107, %c0_108, %c0_109], %129 {strides = array<i32>} : memref<4x8x8xbf16, #tpu.memory_space<vmem>>, vector<1x8x8xbf16>,
      %c3_110 = arith.constant 3 : index
      %c0_111 = arith.constant 0 : index
      %c0_112 = arith.constant 0 : index
      %130 = vector.load %arg7[%c3_110, %c0_111, %c0_112] : memref<4x32x8xbf16, #tpu.memory_space<vmem>>, vector<1x32x8xbf16>
      %131 = vector.shape_cast %130 : vector<1x32x8xbf16> to vector<32x8xbf16>
      %cst_113 = arith.constant dense<0.000000e+00> : vector<8x8xf32>
      %132 = tpu.matmul %85, %131, %cst_113 {dimension_numbers = #tpu.dot_dimension_numbers<[1], [0], [0], [1], [0, 0, 1, 1], [], []>} : vector<8x32xbf16>, vector<32x8xbf16>, vector<8x8xf32> -> vector<8x8xf32>
      %133 = arith.truncf %132 : vector<8x8xf32> to vector<8x8xbf16>
      %c3_114 = arith.constant 3 : index
      %c0_115 = arith.constant 0 : index
      %c0_116 = arith.constant 0 : index
      %134 = vector.load %arg11[%c3_114, %c0_115, %c0_116] : memref<4x8x8xbf16, #tpu.memory_space<vmem>>, vector<1x8x8xbf16>
      %135 = vector.shape_cast %134 : vector<1x8x8xbf16> to vector<8x8xbf16>
      %136 = vector.shape_cast %133 : vector<8x8xbf16> to vector<1x8x8xbf16>
      tpu.vector_store %arg11[%c3_114, %c0_115, %c0_116], %136 {strides = array<i32>} : memref<4x8x8xbf16, #tpu.memory_space<vmem>>, vector<1x8x8xbf16>,
      %c3_117 = arith.constant 3 : index
      %c0_118 = arith.constant 0 : index
      %c0_119 = arith.constant 0 : index
      %137 = vector.load %arg8[%c3_117, %c0_118, %c0_119] : memref<4x32x8xbf16, #tpu.memory_space<vmem>>, vector<1x32x8xbf16>
      %138 = vector.shape_cast %137 : vector<1x32x8xbf16> to vector<32x8xbf16>
      %cst_120 = arith.constant dense<0.000000e+00> : vector<8x8xf32>
      %139 = tpu.matmul %87, %138, %cst_120 {dimension_numbers = #tpu.dot_dimension_numbers<[1], [0], [0], [1], [0, 0, 1, 1], [], []>} : vector<8x32xbf16>, vector<32x8xbf16>, vector<8x8xf32> -> vector<8x8xf32>
      %140 = arith.truncf %139 : vector<8x8xf32> to vector<8x8xbf16>
      %c3_121 = arith.constant 3 : index
      %c0_122 = arith.constant 0 : index
      %c0_123 = arith.constant 0 : index
      %141 = vector.load %arg12[%c3_121, %c0_122, %c0_123] : memref<4x8x8xbf16, #tpu.memory_space<vmem>>, vector<1x8x8xbf16>
      %142 = vector.shape_cast %141 : vector<1x8x8xbf16> to vector<8x8xbf16>
      %143 = vector.shape_cast %140 : vector<8x8xbf16> to vector<1x8x8xbf16>
      tpu.vector_store %arg12[%c3_121, %c0_122, %c0_123], %143 {strides = array<i32>} : memref<4x8x8xbf16, #tpu.memory_space<vmem>>, vector<1x8x8xbf16>,
    } else {
    }
    %c0 = arith.constant 0 : index
    %c0_1 = arith.constant 0 : index
    %c0_2 = arith.constant 0 : index
    %3 = vector.load %arg2[%c0, %c0_1, %c0_2] : memref<1x8x32xbf16, #tpu.memory_space<vmem>>, vector<1x8x32xbf16>
    %4 = vector.shape_cast %3 : vector<1x8x32xbf16> to vector<8x32xbf16>
    %c0_3 = arith.constant 0 : index
    %c0_4 = arith.constant 0 : index
    %c0_5 = arith.constant 0 : index
    %5 = vector.load %arg6[%c0_3, %c0_4, %c0_5] : memref<4x32x8xbf16, #tpu.memory_space<vmem>>, vector<1x32x8xbf16>
    %6 = vector.shape_cast %5 : vector<1x32x8xbf16> to vector<32x8xbf16>
    %cst = arith.constant dense<0.000000e+00> : vector<8x8xf32>
    %7 = tpu.matmul %4, %6, %cst {dimension_numbers = #tpu.dot_dimension_numbers<[1], [0], [0], [1], [0, 0, 1, 1], [], []>} : vector<8x32xbf16>, vector<32x8xbf16>, vector<8x8xf32> -> vector<8x8xf32>
    %8 = arith.truncf %7 : vector<8x8xf32> to vector<8x8xbf16>
    %c0_6 = arith.constant 0 : index
    %c0_7 = arith.constant 0 : index
    %c0_8 = arith.constant 0 : index
    %9 = vector.load %arg13[%c0_6, %c0_7, %c0_8] : memref<4x8x8xbf16, #tpu.memory_space<vmem>>, vector<1x8x8xbf16>
    %10 = vector.shape_cast %9 : vector<1x8x8xbf16> to vector<8x8xbf16>
    %11 = vector.shape_cast %8 : vector<8x8xbf16> to vector<1x8x8xbf16>
    tpu.vector_store %arg13[%c0_6, %c0_7, %c0_8], %11 {strides = array<i32>} : memref<4x8x8xbf16, #tpu.memory_space<vmem>>, vector<1x8x8xbf16>,
    %c1 = arith.constant 1 : index
    %c0_9 = arith.constant 0 : index
    %c0_10 = arith.constant 0 : index
    %12 = vector.load %arg6[%c1, %c0_9, %c0_10] : memref<4x32x8xbf16, #tpu.memory_space<vmem>>, vector<1x32x8xbf16>
    %13 = vector.shape_cast %12 : vector<1x32x8xbf16> to vector<32x8xbf16>
    %cst_11 = arith.constant dense<0.000000e+00> : vector<8x8xf32>
    %14 = tpu.matmul %4, %13, %cst_11 {dimension_numbers = #tpu.dot_dimension_numbers<[1], [0], [0], [1], [0, 0, 1, 1], [], []>} : vector<8x32xbf16>, vector<32x8xbf16>, vector<8x8xf32> -> vector<8x8xf32>
    %15 = arith.truncf %14 : vector<8x8xf32> to vector<8x8xbf16>
    %c1_12 = arith.constant 1 : index
    %c0_13 = arith.constant 0 : index
    %c0_14 = arith.constant 0 : index
    %16 = vector.load %arg13[%c1_12, %c0_13, %c0_14] : memref<4x8x8xbf16, #tpu.memory_space<vmem>>, vector<1x8x8xbf16>
    %17 = vector.shape_cast %16 : vector<1x8x8xbf16> to vector<8x8xbf16>
    %18 = vector.shape_cast %15 : vector<8x8xbf16> to vector<1x8x8xbf16>
    tpu.vector_store %arg13[%c1_12, %c0_13, %c0_14], %18 {strides = array<i32>} : memref<4x8x8xbf16, #tpu.memory_space<vmem>>, vector<1x8x8xbf16>,
    %c2 = arith.constant 2 : index
    %c0_15 = arith.constant 0 : index
    %c0_16 = arith.constant 0 : index
    %19 = vector.load %arg6[%c2, %c0_15, %c0_16] : memref<4x32x8xbf16, #tpu.memory_space<vmem>>, vector<1x32x8xbf16>
    %20 = vector.shape_cast %19 : vector<1x32x8xbf16> to vector<32x8xbf16>
    %cst_17 = arith.constant dense<0.000000e+00> : vector<8x8xf32>
    %21 = tpu.matmul %4, %20, %cst_17 {dimension_numbers = #tpu.dot_dimension_numbers<[1], [0], [0], [1], [0, 0, 1, 1], [], []>} : vector<8x32xbf16>, vector<32x8xbf16>, vector<8x8xf32> -> vector<8x8xf32>
    %22 = arith.truncf %21 : vector<8x8xf32> to vector<8x8xbf16>
    %c2_18 = arith.constant 2 : index
    %c0_19 = arith.constant 0 : index
    %c0_20 = arith.constant 0 : index
    %23 = vector.load %arg13[%c2_18, %c0_19, %c0_20] : memref<4x8x8xbf16, #tpu.memory_space<vmem>>, vector<1x8x8xbf16>
    %24 = vector.shape_cast %23 : vector<1x8x8xbf16> to vector<8x8xbf16>
    %25 = vector.shape_cast %22 : vector<8x8xbf16> to vector<1x8x8xbf16>
    tpu.vector_store %arg13[%c2_18, %c0_19, %c0_20], %25 {strides = array<i32>} : memref<4x8x8xbf16, #tpu.memory_space<vmem>>, vector<1x8x8xbf16>,
    %c3 = arith.constant 3 : index
    %c0_21 = arith.constant 0 : index
    %c0_22 = arith.constant 0 : index
    %26 = vector.load %arg6[%c3, %c0_21, %c0_22] : memref<4x32x8xbf16, #tpu.memory_space<vmem>>, vector<1x32x8xbf16>
    %27 = vector.shape_cast %26 : vector<1x32x8xbf16> to vector<32x8xbf16>
    %cst_23 = arith.constant dense<0.000000e+00> : vector<8x8xf32>
    %28 = tpu.matmul %4, %27, %cst_23 {dimension_numbers = #tpu.dot_dimension_numbers<[1], [0], [0], [1], [0, 0, 1, 1], [], []>} : vector<8x32xbf16>, vector<32x8xbf16>, vector<8x8xf32> -> vector<8x8xf32>
    %29 = arith.truncf %28 : vector<8x8xf32> to vector<8x8xbf16>
    %c3_24 = arith.constant 3 : index
    %c0_25 = arith.constant 0 : index
    %c0_26 = arith.constant 0 : index
    %30 = vector.load %arg13[%c3_24, %c0_25, %c0_26] : memref<4x8x8xbf16, #tpu.memory_space<vmem>>, vector<1x8x8xbf16>
    %31 = vector.shape_cast %30 : vector<1x8x8xbf16> to vector<8x8xbf16>
    %32 = vector.shape_cast %29 : vector<8x8xbf16> to vector<1x8x8xbf16>
    tpu.vector_store %arg13[%c3_24, %c0_25, %c0_26], %32 {strides = array<i32>} : memref<4x8x8xbf16, #tpu.memory_space<vmem>>, vector<1x8x8xbf16>,
    %c0_27 = arith.constant 0 : index
    %c0_28 = arith.constant 0 : index
    %c0_29 = arith.constant 0 : index
    %33 = vector.load %arg13[%c0_27, %c0_28, %c0_29] : memref<4x8x8xbf16, #tpu.memory_space<vmem>>, vector<4x8x8xbf16>
    %c0_30 = arith.constant 0 : index
    %c0_31 = arith.constant 0 : index
    %c0_32 = arith.constant 0 : index
    %34 = vector.load %arg11[%c0_30, %c0_31, %c0_32] : memref<4x8x8xbf16, #tpu.memory_space<vmem>>, vector<4x8x8xbf16>
    %c0_33 = arith.constant 0 : index
    %c0_34 = arith.constant 0 : index
    %c0_35 = arith.constant 0 : index
    %35 = vector.load %arg12[%c0_33, %c0_34, %c0_35] : memref<4x8x8xbf16, #tpu.memory_space<vmem>>, vector<4x8x8xbf16>
    %cst_36 = arith.constant dense<0.000000e+00> : vector<4x8x8xf32>
    %36 = tpu.matmul %33, %34, %cst_36 {dimension_numbers = #tpu.dot_dimension_numbers<[2], [2], [1], [1], [0, 0, 0, 1, 1, 1], [0], [0]>} : vector<4x8x8xbf16>, vector<4x8x8xbf16>, vector<4x8x8xf32> -> vector<4x8x8xf32>
    %c0_37 = arith.constant 0 : index
    %c0_38 = arith.constant 0 : index
    %c0_39 = arith.constant 0 : index
    %37 = vector.load %arg5[%c0_37, %c0_38, %c0_39] : memref<1x8x8xbf16, #tpu.memory_space<vmem>>, vector<1x8x8xbf16>
    %38 = vector.shape_cast %37 : vector<1x8x8xbf16> to vector<8x8xbf16>
    %39 = arith.extf %38 : vector<8x8xbf16> to vector<8x8xf32>
    %40 = vector.shape_cast %39 : vector<8x8xf32> to vector<1x8x8xf32>
    %41 = vector.broadcast %40 : vector<1x8x8xf32> to vector<4x8x8xf32>
    %42 = arith.addf %36, %41 : vector<4x8x8xf32>
    %cst_40 = arith.constant dense<0xFF800000> : vector<4x8xf32>
    %43 = vector.multi_reduction <maximumf>, %42, %cst_40 [2] : vector<4x8x8xf32> to vector<4x8xf32>
    %44 = vector.shape_cast %43 : vector<4x8xf32> to vector<4x8x1xf32>
    %45 = vector.broadcast %44 : vector<4x8x1xf32> to vector<4x8x8xf32>
    %46 = arith.subf %42, %45 : vector<4x8x8xf32>
    %47 = arith.truncf %46 : vector<4x8x8xf32> to vector<4x8x8xbf16>
    %48 = math.exp %47 : vector<4x8x8xbf16>
    %49 = arith.extf %48 : vector<4x8x8xbf16> to vector<4x8x8xf32>
    %cst_41 = arith.constant dense<0.000000e+00> : vector<4x8xf32>
    %50 = vector.multi_reduction <add>, %49, %cst_41 [2] : vector<4x8x8xf32> to vector<4x8xf32>
    %51 = vector.shape_cast %50 : vector<4x8xf32> to vector<4x8x1xf32>
    %52 = tpu.reciprocal %51 {approx = true} : vector<4x8x1xf32> -> vector<4x8x1xf32>
    %53 = arith.truncf %52 : vector<4x8x1xf32> to vector<4x8x1xbf16>
    %54 = vector.broadcast %53 : vector<4x8x1xbf16> to vector<4x8x8xbf16>
    %55 = arith.mulf %48, %54 : vector<4x8x8xbf16>
    %cst_42 = arith.constant dense<0.000000e+00> : vector<4x8x8xf32>
    %56 = tpu.matmul %55, %35, %cst_42 {dimension_numbers = #tpu.dot_dimension_numbers<[2], [1], [1], [2], [0, 0, 0, 1, 1, 2], [0], [0]>} : vector<4x8x8xbf16>, vector<4x8x8xbf16>, vector<4x8x8xf32> -> vector<4x8x8xf32>
    %57 = arith.truncf %56 : vector<4x8x8xf32> to vector<4x8x8xbf16>
    %58 = vector.extract_strided_slice %57 {offsets = [0, 0, 0], sizes = [1, 8, 8], strides = [1, 1, 1]} : vector<4x8x8xbf16> to vector<1x8x8xbf16>
    %59 = vector.shape_cast %58 : vector<1x8x8xbf16> to vector<8x8xbf16>
    %c0_43 = arith.constant 0 : index
    %c0_44 = arith.constant 0 : index
    %c0_45 = arith.constant 0 : index
    %60 = vector.load %arg9[%c0_43, %c0_44, %c0_45] : memref<4x8x32xbf16, #tpu.memory_space<vmem>>, vector<1x8x32xbf16>
    %61 = vector.shape_cast %60 : vector<1x8x32xbf16> to vector<8x32xbf16>
    %cst_46 = arith.constant dense<0.000000e+00> : vector<8x32xf32>
    %62 = tpu.matmul %59, %61, %cst_46 {dimension_numbers = #tpu.dot_dimension_numbers<[1], [0], [0], [1], [0, 0, 1, 1], [], []>} : vector<8x8xbf16>, vector<8x32xbf16>, vector<8x32xf32> -> vector<8x32xf32>
    %63 = vector.extract_strided_slice %57 {offsets = [1, 0, 0], sizes = [1, 8, 8], strides = [1, 1, 1]} : vector<4x8x8xbf16> to vector<1x8x8xbf16>
    %64 = vector.shape_cast %63 : vector<1x8x8xbf16> to vector<8x8xbf16>
    %c1_47 = arith.constant 1 : index
    %c0_48 = arith.constant 0 : index
    %c0_49 = arith.constant 0 : index
    %65 = vector.load %arg9[%c1_47, %c0_48, %c0_49] : memref<4x8x32xbf16, #tpu.memory_space<vmem>>, vector<1x8x32xbf16>
    %66 = vector.shape_cast %65 : vector<1x8x32xbf16> to vector<8x32xbf16>
    %cst_50 = arith.constant dense<0.000000e+00> : vector<8x32xf32>
    %67 = tpu.matmul %64, %66, %cst_50 {dimension_numbers = #tpu.dot_dimension_numbers<[1], [0], [0], [1], [0, 0, 1, 1], [], []>} : vector<8x8xbf16>, vector<8x32xbf16>, vector<8x32xf32> -> vector<8x32xf32>
    %68 = arith.addf %62, %67 : vector<8x32xf32>
    %69 = vector.extract_strided_slice %57 {offsets = [2, 0, 0], sizes = [1, 8, 8], strides = [1, 1, 1]} : vector<4x8x8xbf16> to vector<1x8x8xbf16>
    %70 = vector.shape_cast %69 : vector<1x8x8xbf16> to vector<8x8xbf16>
    %c2_51 = arith.constant 2 : index
    %c0_52 = arith.constant 0 : index
    %c0_53 = arith.constant 0 : index
    %71 = vector.load %arg9[%c2_51, %c0_52, %c0_53] : memref<4x8x32xbf16, #tpu.memory_space<vmem>>, vector<1x8x32xbf16>
    %72 = vector.shape_cast %71 : vector<1x8x32xbf16> to vector<8x32xbf16>
    %cst_54 = arith.constant dense<0.000000e+00> : vector<8x32xf32>
    %73 = tpu.matmul %70, %72, %cst_54 {dimension_numbers = #tpu.dot_dimension_numbers<[1], [0], [0], [1], [0, 0, 1, 1], [], []>} : vector<8x8xbf16>, vector<8x32xbf16>, vector<8x32xf32> -> vector<8x32xf32>
    %74 = arith.addf %68, %73 : vector<8x32xf32>
    %75 = vector.extract_strided_slice %57 {offsets = [3, 0, 0], sizes = [1, 8, 8], strides = [1, 1, 1]} : vector<4x8x8xbf16> to vector<1x8x8xbf16>
    %76 = vector.shape_cast %75 : vector<1x8x8xbf16> to vector<8x8xbf16>
    %c3_55 = arith.constant 3 : index
    %c0_56 = arith.constant 0 : index
    %c0_57 = arith.constant 0 : index
    %77 = vector.load %arg9[%c3_55, %c0_56, %c0_57] : memref<4x8x32xbf16, #tpu.memory_space<vmem>>, vector<1x8x32xbf16>
    %78 = vector.shape_cast %77 : vector<1x8x32xbf16> to vector<8x32xbf16>
    %cst_58 = arith.constant dense<0.000000e+00> : vector<8x32xf32>
    %79 = tpu.matmul %76, %78, %cst_58 {dimension_numbers = #tpu.dot_dimension_numbers<[1], [0], [0], [1], [0, 0, 1, 1], [], []>} : vector<8x8xbf16>, vector<8x32xbf16>, vector<8x32xf32> -> vector<8x32xf32>
    %80 = arith.addf %74, %79 : vector<8x32xf32>
    %c0_59 = arith.constant 0 : index
    %c0_60 = arith.constant 0 : index
    %c0_61 = arith.constant 0 : index
    %81 = vector.load %arg10[%c0_59, %c0_60, %c0_61] : memref<1x8x32xf32, #tpu.memory_space<vmem>>, vector<1x8x32xf32>
    %82 = vector.shape_cast %81 : vector<1x8x32xf32> to vector<8x32xf32>
    %83 = vector.shape_cast %80 : vector<8x32xf32> to vector<1x8x32xf32>
    tpu.vector_store %arg10[%c0_59, %c0_60, %c0_61], %83 {strides = array<i32>} : memref<1x8x32xf32, #tpu.memory_space<vmem>>, vector<1x8x32xf32>,
    return
  }
  func.func @transform_0(%arg0: i32, %arg1: i32) -> (i32, i32, i32) {
    %c0_i32 = arith.constant 0 : i32
    %c0_i32_0 = arith.constant 0 : i32
    return %arg0, %arg1, %c0_i32 : i32, i32, i32
  }
  func.func @transform_1(%arg0: i32, %arg1: i32) -> (i32, i32, i32) {
    %c0_i32 = arith.constant 0 : i32
    %c0_i32_0 = arith.constant 0 : i32
    %c0_i32_1 = arith.constant 0 : i32
    return %arg0, %c0_i32, %c0_i32_0 : i32, i32, i32
  }
  func.func @transform_2(%arg0: i32, %arg1: i32) -> (i32, i32, i32) {
    %c0_i32 = arith.constant 0 : i32
    %c0_i32_0 = arith.constant 0 : i32
    %c0_i32_1 = arith.constant 0 : i32
    return %arg0, %c0_i32, %c0_i32_0 : i32, i32, i32
  }
  func.func @transform_3(%arg0: i32, %arg1: i32) -> (i32, i32, i32) {
    %c0_i32 = arith.constant 0 : i32
    %c0_i32_0 = arith.constant 0 : i32
    %c0_i32_1 = arith.constant 0 : i32
    return %c0_i32, %arg1, %c0_i32_0 : i32, i32, i32
  }
  func.func @transform_4(%arg0: i32, %arg1: i32) -> (i32, i32, i32) {
    %c0_i32 = arith.constant 0 : i32
    %c0_i32_0 = arith.constant 0 : i32
    %c0_i32_1 = arith.constant 0 : i32
    %c0_i32_2 = arith.constant 0 : i32
    return %c0_i32, %c0_i32_0, %c0_i32_1 : i32, i32, i32
  }
  func.func @transform_5(%arg0: i32, %arg1: i32) -> (i32, i32, i32) {
    %c0_i32 = arith.constant 0 : i32
    %c0_i32_0 = arith.constant 0 : i32
    %c0_i32_1 = arith.constant 0 : i32
    %c0_i32_2 = arith.constant 0 : i32
    return %c0_i32, %c0_i32_0, %c0_i32_1 : i32, i32, i32
  }
  func.func @transform_6(%arg0: i32, %arg1: i32) -> (i32, i32, i32) {
    %c0_i32 = arith.constant 0 : i32
    %c0_i32_0 = arith.constant 0 : i32
    %c0_i32_1 = arith.constant 0 : i32
    %c0_i32_2 = arith.constant 0 : i32
    return %c0_i32, %c0_i32_0, %c0_i32_1 : i32, i32, i32
  }
  func.func @transform_7(%arg0: i32, %arg1: i32) -> (i32, i32, i32) {
    %c0_i32 = arith.constant 0 : i32
    %c0_i32_0 = arith.constant 0 : i32
    %c0_i32_1 = arith.constant 0 : i32
    %c0_i32_2 = arith.constant 0 : i32
    return %c0_i32, %c0_i32_0, %c0_i32_1 : i32, i32, i32
  }
  func.func @transform_8(%arg0: i32, %arg1: i32) -> (i32, i32, i32) {
    %c0_i32 = arith.constant 0 : i32
    %c0_i32_0 = arith.constant 0 : i32
    return %arg0, %arg1, %c0_i32 : i32, i32, i32
  }
}

</mosaic_0001>

<llo_original>
// kernel: tpu_custom_call.1
$region0: #{tpu_custom_call.1}
  #allocation0 [shape = 'u32[]', space=smem, size = 0x4, offset = 0x4, fixed_abs, tag = 'smem constant byte address 0x4 - core index']
  #allocation1 [shape = 'u32[144,128]{1,0:T(1,128)}', space=vmem, size = 0x12000, scoped, tag = 'internal scratch']
  #allocation2 [shape = 'bf16[4,8,8]{2,1,0:T(8,128)(2,1)}', space=vmem, size = 0x2000, scoped, tag = 'scratch operand']
  #allocation3 [shape = 'bf16[4,8,8]{2,1,0:T(8,128)(2,1)}', space=vmem, size = 0x2000, scoped, tag = 'scratch operand']
  #allocation4 [shape = 'bf16[4,8,8]{2,1,0:T(8,128)(2,1)}', space=vmem, size = 0x2000, scoped, tag = 'scratch operand']
  %s0 = inlined_call_operand.vmem [shape: bf16[2,8,32], index: 0, kind: input, shape index: {}]
  %s1 = inlined_call_operand.vmem [shape: bf16[2,8,32], index: 1, kind: input, shape index: {}]
  %s2 = inlined_call_operand.vmem [shape: bf16[2,8,32], index: 2, kind: input, shape index: {}]
  %s3 = inlined_call_operand.vmem [shape: bf16[1,8,8], index: 3, kind: input, shape index: {}]
  %s4 = inlined_call_operand.vmem [shape: bf16[4,32,8], index: 4, kind: input, shape index: {}]
  %s5 = inlined_call_operand.vmem [shape: bf16[4,32,8], index: 5, kind: input, shape index: {}]
  %s6 = inlined_call_operand.vmem [shape: bf16[4,32,8], index: 6, kind: input, shape index: {}]
  %s7 = inlined_call_operand.vmem [shape: bf16[4,8,32], index: 7, kind: input, shape index: {}]
  %s8 = inlined_call_operand.hbm [shape: f32[2,8,32], index: 8, kind: output, shape index: {}]
  %s9 = sld [smem:[#allocation0]]
  $region69: #{tpu_custom_call.1} parent=0
    _
  %s11 = ssub.s32 1, %s9
  %s12 = scalar_select 0, %s11, %s9
  $region1: #{tpu_custom_call.1} parent=0
    #allocation5 [shape = 'u8[8192]{0}', space=vmem, size = 0x2000, scoped, tag = 'output window, operand 0']
    #allocation6 [shape = 's32[2]{0}', space=sflag, size = 0x8, scoped, tag = 'scoped memory for tpu_custom_call.1']
    %13 = vsyncpa [#allocation6], 0
    %s14 = scalar_lea.sflag [#allocation6], 1
    %15 = vsyncpa %s14, 0
    loop: start=0, step=1, limit=4
    $region2: #{tpu_custom_call.1} parent=1 // loop_pre_header
      _
    $region3: #{tpu_custom_call.1} parent=1 // loop_header
      %s17 = sphi 0, %s21
      %p18 = scmp.ge.s32.totalorder %s17, 4
      %s24 = sphi 0, %s36
      %s25 = sphi 0, %s32
      %s26 = sphi 0, %s24
      %s27 = sphi 0, %s25
      %s28 = sphi 0, %s26
      %s29 = sphi 0, %s27
      %s41 = sphi 0, %s43
      %s44 = sphi 0, %s41
      %s45 = sphi 0, %s44
      %s61 = sphi 0, %s45
      %s67 = sphi 0, %s69
      %s70 = sphi 0, %s67
      %s71 = sphi 0, %s70
      %s87 = sphi 0, %s71
      %s93 = sphi 0, %s95
      %s96 = sphi 0, %s93
      %s97 = sphi 0, %s96
      %s113 = sphi 0, %s97
      %s119 = sphi 0, %s121
      %s122 = sphi 0, %s119
      %s123 = sphi 0, %s122
      %s139 = sphi 0, %s123
      %s143 = sphi 0, %s143
      %s145 = sphi 0, %s143
      %s146 = sphi 0, %s145
      %s160 = sphi 0, %s146
      %s164 = sphi 0, %s164
      %s166 = sphi 0, %s164
      %s167 = sphi 0, %s166
      %s181 = sphi 0, %s167
      %s185 = sphi 0, %s185
      %s187 = sphi 0, %s185
      %s188 = sphi 0, %s187
      %s202 = sphi 0, %s188
      %s206 = sphi 0, %s206
      %s208 = sphi 0, %s206
      %s209 = sphi 0, %s208
      %s223 = sphi 0, %s209
      %s231 = sphi 0, %s233
      %s234 = sphi 0, %s231
      %s235 = sphi 0, %s234
      %s251 = sphi 0, %s235
    $region4: #{tpu_custom_call.1} parent=1 // loop_header_branch
      %20 = sbr.rel (%p18) target = $region8
    $region5: #{tpu_custom_call.1} parent=1 // loop_body
      %s22 = ssub.s32 %s17, 1
      %s23 = ssub.s32 %s17, 2
      %s30 = sadd.s32 1, %s25
      %p31 = scmp.ge.s32.totalorder %s30, 1
      %s32 = scalar_select %p31, 0, %s30
      %s33 = sadd.s32 1, %s24
      %s34 = scalar_select %p31, %s33, %s24
      %p35 = scmp.ge.s32.totalorder %s34, 2
      %s36 = scalar_select %p35, 0, %s34
      %s37 = ssub.s32 %s24, %s36
      %s38 = ssub.s32 %s25, %s32
      %s39 = sor.u32 %s37, %s38
      %p40 = scmp.eq.s32.totalorder %s39, 0
      %s42 = sadd.s32 %s41, 1
      %s43 = scalar_select %p40, %s41, %s42
      %p46 = pneg %p40
      %p47 = scmp.eq.s32.totalorder %s17, 1
      %p48 = por %p46, %p47
      %p49 = scmp.ne.s32.totalorder %s41, %s44
      %p50 = scmp.eq.s32.totalorder %s17, 0
      %p51 = por %p49, %p50
      %p52 = scmp.ne.s32.totalorder %s41, %s44
      %p53 = scmp.eq.s32.totalorder %s22, 1
      %p54 = por %p52, %p53
      %p55 = scmp.ne.s32.totalorder %s44, %s45
      %p56 = scmp.eq.s32.totalorder %s22, 0
      %p57 = por %p55, %p56
      %p58 = scmp.ne.s32.totalorder %s44, %s45
      %p59 = scmp.eq.s32.totalorder %s23, 1
      %p60 = por %p58, %p59
      %p62 = scmp.ne.s32.totalorder %s45, %s61
      %p63 = scmp.eq.s32.totalorder %s23, 0
      %p64 = por %p62, %p63
      %s65 = ssub.s32 %s24, %s36
      %p66 = scmp.eq.s32.totalorder %s65, 0
      %s68 = sadd.s32 %s67, 1
      %s69 = scalar_select %p66, %s67, %s68
      %p72 = pneg %p66
      %p73 = scmp.eq.s32.totalorder %s17, 1
      %p74 = por %p72, %p73
      %p75 = scmp.ne.s32.totalorder %s67, %s70
      %p76 = scmp.eq.s32.totalorder %s17, 0
      %p77 = por %p75, %p76
      %p78 = scmp.ne.s32.totalorder %s67, %s70
      %p79 = scmp.eq.s32.totalorder %s22, 1
      %p80 = por %p78, %p79
      %p81 = scmp.ne.s32.totalorder %s70, %s71
      %p82 = scmp.eq.s32.totalorder %s22, 0
      %p83 = por %p81, %p82
      %p84 = scmp.ne.s32.totalorder %s70, %s71
      %p85 = scmp.eq.s32.totalorder %s23, 1
      %p86 = por %p84, %p85
      %p88 = scmp.ne.s32.totalorder %s71, %s87
      %p89 = scmp.eq.s32.totalorder %s23, 0
      %p90 = por %p88, %p89
      %s91 = ssub.s32 %s24, %s36
      %p92 = scmp.eq.s32.totalorder %s91, 0
      %s94 = sadd.s32 %s93, 1
      %s95 = scalar_select %p92, %s93, %s94
      %p98 = pneg %p92
      %p99 = scmp.eq.s32.totalorder %s17, 1
      %p100 = por %p98, %p99
      %p101 = scmp.ne.s32.totalorder %s93, %s96
      %p102 = scmp.eq.s32.totalorder %s17, 0
      %p103 = por %p101, %p102
      %p104 = scmp.ne.s32.totalorder %s93, %s96
      %p105 = scmp.eq.s32.totalorder %s22, 1
      %p106 = por %p104, %p105
      %p107 = scmp.ne.s32.totalorder %s96, %s97
      %p108 = scmp.eq.s32.totalorder %s22, 0
      %p109 = por %p107, %p108
      %p110 = scmp.ne.s32.totalorder %s96, %s97
      %p111 = scmp.eq.s32.totalorder %s23, 1
      %p112 = por %p110, %p111
      %p114 = scmp.ne.s32.totalorder %s97, %s113
      %p115 = scmp.eq.s32.totalorder %s23, 0
      %p116 = por %p114, %p115
      %s117 = ssub.s32 %s25, %s32
      %p118 = scmp.eq.s32.totalorder %s117, 0
      %s120 = sadd.s32 %s119, 1
      %s121 = scalar_select %p118, %s119, %s120
      %p124 = pneg %p118
      %p125 = scmp.eq.s32.totalorder %s17, 1
      %p126 = por %p124, %p125
      %p127 = scmp.ne.s32.totalorder %s119, %s122
      %p128 = scmp.eq.s32.totalorder %s17, 0
      %p129 = por %p127, %p128
      %p130 = scmp.ne.s32.totalorder %s119, %s122
      %p131 = scmp.eq.s32.totalorder %s22, 1
      %p132 = por %p130, %p131
      %p133 = scmp.ne.s32.totalorder %s122, %s123
      %p134 = scmp.eq.s32.totalorder %s22, 0
      %p135 = por %p133, %p134
      %p136 = scmp.ne.s32.totalorder %s122, %s123
      %p137 = scmp.eq.s32.totalorder %s23, 1
      %p138 = por %p136, %p137
      %p140 = scmp.ne.s32.totalorder %s123, %s139
      %p141 = scmp.eq.s32.totalorder %s23, 0
      %p142 = por %p140, %p141
      %s144 = sadd.s32 %s143, 1
      %p147 = scmp.eq.s32.totalorder %s17, 1
      %p148 = scmp.ne.s32.totalorder %s143, %s145
      %p149 = scmp.eq.s32.totalorder %s17, 0
      %p150 = por %p148, %p149
      %p151 = scmp.ne.s32.totalorder %s143, %s145
      %p152 = scmp.eq.s32.totalorder %s22, 1
      %p153 = por %p151, %p152
      %p154 = scmp.ne.s32.totalorder %s145, %s146
      %p155 = scmp.eq.s32.totalorder %s22, 0
      %p156 = por %p154, %p155
      %p157 = scmp.ne.s32.totalorder %s145, %s146
      %p158 = scmp.eq.s32.totalorder %s23, 1
      %p159 = por %p157, %p158
      %p161 = scmp.ne.s32.totalorder %s146, %s160
      %p162 = scmp.eq.s32.totalorder %s23, 0
      %p163 = por %p161, %p162
      %s165 = sadd.s32 %s164, 1
      %p168 = scmp.eq.s32.totalorder %s17, 1
      %p169 = scmp.ne.s32.totalorder %s164, %s166
      %p170 = scmp.eq.s32.totalorder %s17, 0
      %p171 = por %p169, %p170
      %p172 = scmp.ne.s32.totalorder %s164, %s166
      %p173 = scmp.eq.s32.totalorder %s22, 1
      %p174 = por %p172, %p173
      %p175 = scmp.ne.s32.totalorder %s166, %s167
      %p176 = scmp.eq.s32.totalorder %s22, 0
      %p177 = por %p175, %p176
      %p178 = scmp.ne.s32.totalorder %s166, %s167
      %p179 = scmp.eq.s32.totalorder %s23, 1
      %p180 = por %p178, %p179
      %p182 = scmp.ne.s32.totalorder %s167, %s181
      %p183 = scmp.eq.s32.totalorder %s23, 0
      %p184 = por %p182, %p183
      %s186 = sadd.s32 %s185, 1
      %p189 = scmp.eq.s32.totalorder %s17, 1
      %p190 = scmp.ne.s32.totalorder %s185, %s187
      %p191 = scmp.eq.s32.totalorder %s17, 0
      %p192 = por %p190, %p191
      %p193 = scmp.ne.s32.totalorder %s185, %s187
      %p194 = scmp.eq.s32.totalorder %s22, 1
      %p195 = por %p193, %p194
      %p196 = scmp.ne.s32.totalorder %s187, %s188
      %p197 = scmp.eq.s32.totalorder %s22, 0
      %p198 = por %p196, %p197
      %p199 = scmp.ne.s32.totalorder %s187, %s188
      %p200 = scmp.eq.s32.totalorder %s23, 1
      %p201 = por %p199, %p200
      %p203 = scmp.ne.s32.totalorder %s188, %s202
      %p204 = scmp.eq.s32.totalorder %s23, 0
      %p205 = por %p203, %p204
      %s207 = sadd.s32 %s206, 1
      %p210 = scmp.eq.s32.totalorder %s17, 1
      %p211 = scmp.ne.s32.totalorder %s206, %s208
      %p212 = scmp.eq.s32.totalorder %s17, 0
      %p213 = por %p211, %p212
      %p214 = scmp.ne.s32.totalorder %s206, %s208
      %p215 = scmp.eq.s32.totalorder %s22, 1
      %p216 = por %p214, %p215
      %p217 = scmp.ne.s32.totalorder %s208, %s209
      %p218 = scmp.eq.s32.totalorder %s22, 0
      %p219 = por %p217, %p218
      %p220 = scmp.ne.s32.totalorder %s208, %s209
      %p221 = scmp.eq.s32.totalorder %s23, 1
      %p222 = por %p220, %p221
      %p224 = scmp.ne.s32.totalorder %s209, %s223
      %p225 = scmp.eq.s32.totalorder %s23, 0
      %p226 = por %p224, %p225
      %s227 = ssub.s32 %s24, %s36
      %s228 = ssub.s32 %s25, %s32
      %s229 = sor.u32 %s227, %s228
      %p230 = scmp.eq.s32.totalorder %s229, 0
      %s232 = sadd.s32 %s231, 1
      %s233 = scalar_select %p230, %s231, %s232
      %p236 = pneg %p230
      %p237 = scmp.eq.s32.totalorder %s17, 1
      %p238 = por %p236, %p237
      %p239 = scmp.ne.s32.totalorder %s231, %s234
      %p240 = scmp.eq.s32.totalorder %s17, 0
      %p241 = por %p239, %p240
      %p242 = scmp.ne.s32.totalorder %s231, %s234
      %p243 = scmp.eq.s32.totalorder %s22, 1
      %p244 = por %p242, %p243
      %p245 = scmp.ne.s32.totalorder %s234, %s235
      %p246 = scmp.eq.s32.totalorder %s22, 0
      %p247 = por %p245, %p246
      %p248 = scmp.ne.s32.totalorder %s234, %s235
      %p249 = scmp.eq.s32.totalorder %s23, 1
      %p250 = por %p248, %p249
      %p252 = scmp.ne.s32.totalorder %s235, %s251
      %p253 = scmp.eq.s32.totalorder %s23, 0
      %p254 = por %p252, %p253
      %p255 = scmp.le.s32.totalorder 1, %s17
      %p256 = scmp.lt.s32.totalorder %s17, 3
      %p257 = pnand %p255, %p256
      %p258 = pneg %p257
      // Predicated region
      $region9: #{tpu_custom_call.1} parent=5 // pred_check
        _
      $region10: #{tpu_custom_call.1} parent=5 // pred_check_branch
        %260 = sbr.rel (%p257) target = $region12
      $region11: #{tpu_custom_call.1} parent=5 // pred_region
        %s261 = ssub.s32 %s17, 1
        // Predicated region
        $region13: #{tpu_custom_call.1} parent=11 // pred_check
          %p262 = pneg %p83
        $region14: #{tpu_custom_call.1} parent=11 // pred_check_branch
          %264 = sbr.rel (%p262) target = $region16
        $region15: #{tpu_custom_call.1} parent=11 // pred_region
          %p265 = scmp.lt.s32.totalorder %s26, 1
          %s266 = scalar_select %p265, %s26, 1
          %s267 = smul.addr %s266, 4
          %s268 = scalar_lea.vmem %s1, %s267
        $region16: #{tpu_custom_call.1} parent=11 // pred_fallthru
          _
        // Predicated region
        $region17: #{tpu_custom_call.1} parent=11 // pred_check
          %p269 = pneg %p109
        $region18: #{tpu_custom_call.1} parent=11 // pred_check_branch
          %271 = sbr.rel (%p269) target = $region20
        $region19: #{tpu_custom_call.1} parent=11 // pred_region
          %p272 = scmp.lt.s32.totalorder %s26, 1
          %s273 = scalar_select %p272, %s26, 1
          %s274 = smul.addr %s273, 4
          %s275 = scalar_lea.vmem %s2, %s274
        $region20: #{tpu_custom_call.1} parent=11 // pred_fallthru
          _
        // Predicated region
        $region21: #{tpu_custom_call.1} parent=11 // pred_check
          %p276 = pneg %p135
        $region22: #{tpu_custom_call.1} parent=11 // pred_check_branch
          %278 = sbr.rel (%p276) target = $region24
        $region23: #{tpu_custom_call.1} parent=11 // pred_region
          %p279 = scmp.lt.s32.totalorder %s27, 0
          %s280 = scalar_select %p279, %s27, 0
          %s281 = smul.addr %s280, 4
          %s282 = scalar_lea.vmem %s3, %s281
        $region24: #{tpu_custom_call.1} parent=11 // pred_fallthru
          _
        // Predicated region
        $region25: #{tpu_custom_call.1} parent=11 // pred_check
          %p283 = pneg %p156
        $region26: #{tpu_custom_call.1} parent=11 // pred_check_branch
          %285 = sbr.rel (%p283) target = $region28
        $region27: #{tpu_custom_call.1} parent=11 // pred_region
          _
        $region28: #{tpu_custom_call.1} parent=11 // pred_fallthru
          _
        // Predicated region
        $region29: #{tpu_custom_call.1} parent=11 // pred_check
          %p286 = pneg %p177
        $region30: #{tpu_custom_call.1} parent=11 // pred_check_branch
          %288 = sbr.rel (%p286) target = $region32
        $region31: #{tpu_custom_call.1} parent=11 // pred_region
          _
        $region32: #{tpu_custom_call.1} parent=11 // pred_fallthru
          _
        // Predicated region
        $region33: #{tpu_custom_call.1} parent=11 // pred_check
          %p289 = pneg %p198
        $region34: #{tpu_custom_call.1} parent=11 // pred_check_branch
          %291 = sbr.rel (%p289) target = $region36
        $region35: #{tpu_custom_call.1} parent=11 // pred_region
          _
        $region36: #{tpu_custom_call.1} parent=11 // pred_fallthru
          _
        // Predicated region
        $region37: #{tpu_custom_call.1} parent=11 // pred_check
          %p292 = pneg %p219
        $region38: #{tpu_custom_call.1} parent=11 // pred_check_branch
          %294 = sbr.rel (%p292) target = $region40
        $region39: #{tpu_custom_call.1} parent=11 // pred_region
          _
        $region40: #{tpu_custom_call.1} parent=11 // pred_fallthru
          _
      $region12: #{tpu_custom_call.1} parent=5 // pred_fallthru
        _
      %p295 = scmp.lt.s32.totalorder %s17, 2
      // Predicated region
      $region41: #{tpu_custom_call.1} parent=5 // pred_check
        %p296 = pneg %p295
      $region42: #{tpu_custom_call.1} parent=5 // pred_check_branch
        %298 = sbr.rel (%p296) target = $region44
      $region43: #{tpu_custom_call.1} parent=5 // pred_region
        // Predicated region
        $region45: #{tpu_custom_call.1} parent=43 // pred_check
          %p299 = pneg %p51
        $region46: #{tpu_custom_call.1} parent=43 // pred_check_branch
          %301 = sbr.rel (%p299) target = $region48
        $region47: #{tpu_custom_call.1} parent=43 // pred_region
          %p302 = scmp.lt.s32.totalorder %s24, 1
          %s303 = scalar_select %p302, %s24, 1
          %p304 = scmp.lt.s32.totalorder %s25, 0
          %s305 = scalar_select %p304, %s25, 0
          %s306 = sadd.s32 %s305, %s303
          %s307 = smul.addr %s306, 4
          %s308 = scalar_lea.vmem %s0, %s307
        $region48: #{tpu_custom_call.1} parent=43 // pred_fallthru
          _
      $region44: #{tpu_custom_call.1} parent=5 // pred_fallthru
        _
      %p309 = scmp.le.s32.totalorder 1, %s17
      %p310 = scmp.lt.s32.totalorder %s17, 3
      %p311 = pnand %p309, %p310
      %p312 = pneg %p311
      // Predicated region
      $region49: #{tpu_custom_call.1} parent=5 // pred_check
        _
      $region50: #{tpu_custom_call.1} parent=5 // pred_check_branch
        %314 = sbr.rel (%p311) target = $region52
      $region51: #{tpu_custom_call.1} parent=5 // pred_region
        %s315 = ssub.s32 %s17, 1
        %p316 = scmp.lt.s32.totalorder %s26, 1
        %s317 = scalar_select %p316, %s26, 1
        %p318 = scmp.lt.s32.totalorder %s27, 0
        %s319 = scalar_select %p318, %s27, 0
        %s320 = sadd.s32 %s319, %s317
        %s321 = smul.addr %s320, 4
        %s322 = scalar_lea.vmem %s0, %s321
        %p323 = pneg %p57
        %p324 = pneg %p54
        %p325 = scmp.lt.s32.totalorder %s26, 1
        %s326 = scalar_select %p325, %s26, 1
        %s327 = smul.addr %s326, 4
        %s328 = scalar_lea.vmem %s1, %s327
        %p329 = pneg %p83
        %p330 = pneg %p80
        %p331 = scmp.lt.s32.totalorder %s26, 1
        %s332 = scalar_select %p331, %s26, 1
        %s333 = smul.addr %s332, 4
        %s334 = scalar_lea.vmem %s2, %s333
        %p335 = pneg %p109
        %p336 = pneg %p106
        %p337 = scmp.lt.s32.totalorder %s27, 0
        %s338 = scalar_select %p337, %s27, 0
        %s339 = smul.addr %s338, 4
        %s340 = scalar_lea.vmem %s3, %s339
        %p341 = pneg %p135
        %p342 = pneg %p132
        %p343 = pneg %p156
        %p344 = pneg %p153
        %p345 = pneg %p177
        %p346 = pneg %p174
        %p347 = pneg %p198
        %p348 = pneg %p195
        %p349 = pneg %p219
        %p350 = pneg %p216
        %p351 = pneg %p247
        %p352 = pneg %p244
        %s353 = sand.u32 %s234, 1
        %s354 = scalar_lea.sflag [#allocation6], %s353
        %s355 = sand.u32 %s234, 1
        %s356 = smul.addr %s355, 8
        %s357 = scalar_lea.vmem [#allocation5], %s356
        %p358 = scmp.lt.s32.totalorder %s26, 1
        %s359 = scalar_select %p358, %s26, 1
        %p360 = scmp.lt.s32.totalorder %s27, 0
        %s361 = scalar_select %p360, %s27, 0
        %s362 = sadd.s32 %s361, %s359
        %s363 = smul.addr %s362, 4
        %s364 = scalar_lea.vmem %s0, %s363
        %p365 = scmp.lt.s32.totalorder %s26, 1
        %s366 = scalar_select %p365, %s26, 1
        %s367 = smul.addr %s366, 4
        %s368 = scalar_lea.vmem %s1, %s367
        %p369 = scmp.lt.s32.totalorder %s26, 1
        %s370 = scalar_select %p369, %s26, 1
        %s371 = smul.addr %s370, 4
        %s372 = scalar_lea.vmem %s2, %s371
        %p373 = scmp.lt.s32.totalorder %s27, 0
        %s374 = scalar_select %p373, %s27, 0
        %s375 = smul.addr %s374, 4
        %s376 = scalar_lea.vmem %s3, %s375
        %p378 = scmp.eq.s32.totalorder %s27, 0
        // Predicated region
        $region53: #{tpu_custom_call.1} parent=51 // pred_check
          %p379 = pneg %p378
        $region54: #{tpu_custom_call.1} parent=51 // pred_check_branch
          %381 = sbr.rel (%p379) target = $region56
        $region55: #{tpu_custom_call.1} parent=51 // pred_region
          %v382 = vld [vmem:[%s368] sm:$0xf]
          %v383 = vld [vmem:[%s372] sm:$0xf]
          %v384 = vld [vmem:[%s5] sm:$0xf]
          %v385 = vld [vmem:[%s5 + $0x4] sm:$0xf]
          %v386 = vld [vmem:[%s5 + $0x8] sm:$0xf]
          %v387 = vld [vmem:[%s5 + $0xc] sm:$0xf]
          %v392 = vunpack.c.l.b16 %v384
          %v393 = vunpack.c.l.b16 %v385
          %v394 = vunpack.c.l.b16 %v386
          %v395 = vunpack.c.l.b16 %v387
          %v396 = vpack.c.b16 %v393, %v392
          %v397 = vpack.c.b16 %v395, %v394
          %vm400 = vcmask 261120
          %v402 = vsel %vm400, %v382, 0
          %404 = vmatprep.subr.bf16.mxu0 0
          %405 = vmatpush1.bf16.msra.mxu0 %v396
          %406 = vmatprep.subr.bf16.mxu0 0
          %407 = vmatpush1.bf16.msra.mxu0 %v397
          %408 = vmatprep.subr.bf16.mxu0 0
          %409 = vmatpush1.bf16.msra.mxu0 0
          %410 = vmatprep.subr.bf16.mxu0 0
          %411 = vmatpush1.bf16.msra.mxu0 0
          %412 = vmatprep.subr.bf16.mxu0 0
          %413 = vmatpush1.bf16.msra.mxu0 0
          %414 = vmatprep.subr.bf16.mxu0 0
          %415 = vmatpush1.bf16.msra.mxu0 0
          %416 = vmatprep.subr.bf16.mxu0 0
          %417 = vmatpush1.bf16.msra.mxu0 0
          %418 = vmatprep.subr.bf16.mxu0 0
          %419 = vmatpush1.bf16.msra.mxu0 0
          %420 = vmatprep.subr.bf16.mxu0 0
          %421 = vmatpush1.bf16.msra.mxu0 0
          %422 = vmatprep.subr.bf16.mxu0 0
          %423 = vmatpush1.bf16.msra.mxu0 0
          %424 = vmatprep.subr.bf16.mxu0 0
          %425 = vmatpush1.bf16.msra.mxu0 0
          %426 = vmatprep.subr.bf16.mxu0 0
          %427 = vmatpush1.bf16.msra.mxu0 0
          %428 = vmatprep.subr.bf16.mxu0 0
          %429 = vmatpush1.bf16.msra.mxu0 0
          %430 = vmatprep.subr.bf16.mxu0 0
          %431 = vmatpush1.bf16.msra.mxu0 0
          %432 = vmatprep.subr.bf16.mxu0 0
          %433 = vmatpush1.bf16.msra.mxu0 0
          %434 = vmatprep.subr.bf16.mxu0 0
          %435 = vmatpush1.bf16.msra.mxu0 0
          %436 = vmatprep.mubr.bf16.mxu0 0
          %437 = vmatmul.mubr.bf16.gmra.mrb[0].mxu0 %v402
          %v438 = vpop.f32.mrb[0].mxu0
          %v439 = vadd.f32 0.0, %v438
          %v440 = vpop.f32.mrb[0].mxu0
          %v441 = vpop.f32.mrb[0].mxu0
          %v442 = vpop.f32.mrb[0].mxu0
          %443 = vdwg.mxu0
          %v444 = vpack.c.bf16 %v439, %v439
          %vm445 = vcmask 60416
          %446 = vst.msk [vmem:[#allocation2] sm:$0xf] %vm445, %v444
          %v447 = vld [vmem:[%s6] sm:$0xf]
          %v448 = vld [vmem:[%s6 + $0x4] sm:$0xf]
          %v449 = vld [vmem:[%s6 + $0x8] sm:$0xf]
          %v450 = vld [vmem:[%s6 + $0xc] sm:$0xf]
          %v455 = vunpack.c.l.b16 %v447
          %v456 = vunpack.c.l.b16 %v448
          %v457 = vunpack.c.l.b16 %v449
          %v458 = vunpack.c.l.b16 %v450
          %v459 = vpack.c.b16 %v456, %v455
          %v460 = vpack.c.b16 %v458, %v457
          %v464 = vsel %vm400, %v383, 0
          %466 = vmatprep.subr.bf16.mxu0 0
          %467 = vmatpush1.bf16.msra.mxu0 %v459
          %468 = vmatprep.subr.bf16.mxu0 0
          %469 = vmatpush1.bf16.msra.mxu0 %v460
          %470 = vmatprep.subr.bf16.mxu0 0
          %471 = vmatpush1.bf16.msra.mxu0 0
          %472 = vmatprep.subr.bf16.mxu0 0
          %473 = vmatpush1.bf16.msra.mxu0 0
          %474 = vmatprep.subr.bf16.mxu0 0
          %475 = vmatpush1.bf16.msra.mxu0 0
          %476 = vmatprep.subr.bf16.mxu0 0
          %477 = vmatpush1.bf16.msra.mxu0 0
          %478 = vmatprep.subr.bf16.mxu0 0
          %479 = vmatpush1.bf16.msra.mxu0 0
          %480 = vmatprep.subr.bf16.mxu0 0
          %481 = vmatpush1.bf16.msra.mxu0 0
          %482 = vmatprep.subr.bf16.mxu0 0
          %483 = vmatpush1.bf16.msra.mxu0 0
          %484 = vmatprep.subr.bf16.mxu0 0
          %485 = vmatpush1.bf16.msra.mxu0 0
          %486 = vmatprep.subr.bf16.mxu0 0
          %487 = vmatpush1.bf16.msra.mxu0 0
          %488 = vmatprep.subr.bf16.mxu0 0
          %489 = vmatpush1.bf16.msra.mxu0 0
          %490 = vmatprep.subr.bf16.mxu0 0
          %491 = vmatpush1.bf16.msra.mxu0 0
          %492 = vmatprep.subr.bf16.mxu0 0
          %493 = vmatpush1.bf16.msra.mxu0 0
          %494 = vmatprep.subr.bf16.mxu0 0
          %495 = vmatpush1.bf16.msra.mxu0 0
          %496 = vmatprep.subr.bf16.mxu0 0
          %497 = vmatpush1.bf16.msra.mxu0 0
          %498 = vmatprep.mubr.bf16.mxu0 0
          %499 = vmatmul.mubr.bf16.gmra.mrb[0].mxu0 %v464
          %v500 = vpop.f32.mrb[0].mxu0
          %v501 = vadd.f32 0.0, %v500
          %v502 = vpop.f32.mrb[0].mxu0
          %v503 = vpop.f32.mrb[0].mxu0
          %v504 = vpop.f32.mrb[0].mxu0
          %505 = vdwg.mxu0
          %v506 = vpack.c.bf16 %v501, %v501
          %507 = vst.msk [vmem:[#allocation3] sm:$0xf] %vm445, %v506
          %s508 = scalar_lea.vmem %s5, 16
          %v509 = vld [vmem:[%s508] sm:$0xf]
          %v510 = vld [vmem:[%s508 + $0x4] sm:$0xf]
          %v511 = vld [vmem:[%s508 + $0x8] sm:$0xf]
          %v512 = vld [vmem:[%s508 + $0xc] sm:$0xf]
          %v517 = vunpack.c.l.b16 %v509
          %v518 = vunpack.c.l.b16 %v510
          %v519 = vunpack.c.l.b16 %v511
          %v520 = vunpack.c.l.b16 %v512
          %v521 = vpack.c.b16 %v518, %v517
          %v522 = vpack.c.b16 %v520, %v519
          %525 = vmatprep.subr.bf16.mxu0 0
          %526 = vmatpush1.bf16.msra.mxu0 %v521
          %527 = vmatprep.subr.bf16.mxu0 0
          %528 = vmatpush1.bf16.msra.mxu0 %v522
          %529 = vmatprep.subr.bf16.mxu0 0
          %530 = vmatpush1.bf16.msra.mxu0 0
          %531 = vmatprep.subr.bf16.mxu0 0
          %532 = vmatpush1.bf16.msra.mxu0 0
          %533 = vmatprep.subr.bf16.mxu0 0
          %534 = vmatpush1.bf16.msra.mxu0 0
          %535 = vmatprep.subr.bf16.mxu0 0
          %536 = vmatpush1.bf16.msra.mxu0 0
          %537 = vmatprep.subr.bf16.mxu0 0
          %538 = vmatpush1.bf16.msra.mxu0 0
          %539 = vmatprep.subr.bf16.mxu0 0
          %540 = vmatpush1.bf16.msra.mxu0 0
          %541 = vmatprep.subr.bf16.mxu0 0
          %542 = vmatpush1.bf16.msra.mxu0 0
          %543 = vmatprep.subr.bf16.mxu0 0
          %544 = vmatpush1.bf16.msra.mxu0 0
          %545 = vmatprep.subr.bf16.mxu0 0
          %546 = vmatpush1.bf16.msra.mxu0 0
          %547 = vmatprep.subr.bf16.mxu0 0
          %548 = vmatpush1.bf16.msra.mxu0 0
          %549 = vmatprep.subr.bf16.mxu0 0
          %550 = vmatpush1.bf16.msra.mxu0 0
          %551 = vmatprep.subr.bf16.mxu0 0
          %552 = vmatpush1.bf16.msra.mxu0 0
          %553 = vmatprep.subr.bf16.mxu0 0
          %554 = vmatpush1.bf16.msra.mxu0 0
          %555 = vmatprep.subr.bf16.mxu0 0
          %556 = vmatpush1.bf16.msra.mxu0 0
          %557 = vmatprep.mubr.bf16.mxu0 0
          %558 = vmatmul.mubr.bf16.gmra.mrb[0].mxu0 %v402
          %v559 = vpop.f32.mrb[0].mxu0
          %v560 = vadd.f32 0.0, %v559
          %v561 = vpop.f32.mrb[0].mxu0
          %v562 = vpop.f32.mrb[0].mxu0
          %v563 = vpop.f32.mrb[0].mxu0
          %564 = vdwg.mxu0
          %v565 = vpack.c.bf16 %v560, %v560
          %s566 = scalar_lea.vmem [#allocation2], 4
          %567 = vst.msk [vmem:[%s566] sm:$0xf] %vm445, %v565
          %s568 = scalar_lea.vmem %s6, 16
          %v569 = vld [vmem:[%s568] sm:$0xf]
          %v570 = vld [vmem:[%s568 + $0x4] sm:$0xf]
          %v571 = vld [vmem:[%s568 + $0x8] sm:$0xf]
          %v572 = vld [vmem:[%s568 + $0xc] sm:$0xf]
          %v577 = vunpack.c.l.b16 %v569
          %v578 = vunpack.c.l.b16 %v570
          %v579 = vunpack.c.l.b16 %v571
          %v580 = vunpack.c.l.b16 %v572
          %v581 = vpack.c.b16 %v578, %v577
          %v582 = vpack.c.b16 %v580, %v579
          %585 = vmatprep.subr.bf16.mxu0 0
          %586 = vmatpush1.bf16.msra.mxu0 %v581
          %587 = vmatprep.subr.bf16.mxu0 0
          %588 = vmatpush1.bf16.msra.mxu0 %v582
          %589 = vmatprep.subr.bf16.mxu0 0
          %590 = vmatpush1.bf16.msra.mxu0 0
          %591 = vmatprep.subr.bf16.mxu0 0
          %592 = vmatpush1.bf16.msra.mxu0 0
          %593 = vmatprep.subr.bf16.mxu0 0
          %594 = vmatpush1.bf16.msra.mxu0 0
          %595 = vmatprep.subr.bf16.mxu0 0
          %596 = vmatpush1.bf16.msra.mxu0 0
          %597 = vmatprep.subr.bf16.mxu0 0
          %598 = vmatpush1.bf16.msra.mxu0 0
          %599 = vmatprep.subr.bf16.mxu0 0
          %600 = vmatpush1.bf16.msra.mxu0 0
          %601 = vmatprep.subr.bf16.mxu0 0
          %602 = vmatpush1.bf16.msra.mxu0 0
          %603 = vmatprep.subr.bf16.mxu0 0
          %604 = vmatpush1.bf16.msra.mxu0 0
          %605 = vmatprep.subr.bf16.mxu0 0
          %606 = vmatpush1.bf16.msra.mxu0 0
          %607 = vmatprep.subr.bf16.mxu0 0
          %608 = vmatpush1.bf16.msra.mxu0 0
          %609 = vmatprep.subr.bf16.mxu0 0
          %610 = vmatpush1.bf16.msra.mxu0 0
          %611 = vmatprep.subr.bf16.mxu0 0
          %612 = vmatpush1.bf16.msra.mxu0 0
          %613 = vmatprep.subr.bf16.mxu0 0
          %614 = vmatpush1.bf16.msra.mxu0 0
          %615 = vmatprep.subr.bf16.mxu0 0
          %616 = vmatpush1.bf16.msra.mxu0 0
          %617 = vmatprep.mubr.bf16.mxu0 0
          %618 = vmatmul.mubr.bf16.gmra.mrb[0].mxu0 %v464
          %v619 = vpop.f32.mrb[0].mxu0
          %v620 = vadd.f32 0.0, %v619
          %v621 = vpop.f32.mrb[0].mxu0
          %v622 = vpop.f32.mrb[0].mxu0
          %v623 = vpop.f32.mrb[0].mxu0
          %624 = vdwg.mxu0
          %v625 = vpack.c.bf16 %v620, %v620
          %s626 = scalar_lea.vmem [#allocation3], 4
          %627 = vst.msk [vmem:[%s626] sm:$0xf] %vm445, %v625
          %s628 = scalar_lea.vmem %s5, 32
          %v629 = vld [vmem:[%s628] sm:$0xf]
          %v630 = vld [vmem:[%s628 + $0x4] sm:$0xf]
          %v631 = vld [vmem:[%s628 + $0x8] sm:$0xf]
          %v632 = vld [vmem:[%s628 + $0xc] sm:$0xf]
          %v637 = vunpack.c.l.b16 %v629
          %v638 = vunpack.c.l.b16 %v630
          %v639 = vunpack.c.l.b16 %v631
          %v640 = vunpack.c.l.b16 %v632
          %v641 = vpack.c.b16 %v638, %v637
          %v642 = vpack.c.b16 %v640, %v639
          %645 = vmatprep.subr.bf16.mxu0 0
          %646 = vmatpush1.bf16.msra.mxu0 %v641
          %647 = vmatprep.subr.bf16.mxu0 0
          %648 = vmatpush1.bf16.msra.mxu0 %v642
          %649 = vmatprep.subr.bf16.mxu0 0
          %650 = vmatpush1.bf16.msra.mxu0 0
          %651 = vmatprep.subr.bf16.mxu0 0
          %652 = vmatpush1.bf16.msra.mxu0 0
          %653 = vmatprep.subr.bf16.mxu0 0
          %654 = vmatpush1.bf16.msra.mxu0 0
          %655 = vmatprep.subr.bf16.mxu0 0
          %656 = vmatpush1.bf16.msra.mxu0 0
          %657 = vmatprep.subr.bf16.mxu0 0
          %658 = vmatpush1.bf16.msra.mxu0 0
          %659 = vmatprep.subr.bf16.mxu0 0
          %660 = vmatpush1.bf16.msra.mxu0 0
          %661 = vmatprep.subr.bf16.mxu0 0
          %662 = vmatpush1.bf16.msra.mxu0 0
          %663 = vmatprep.subr.bf16.mxu0 0
          %664 = vmatpush1.bf16.msra.mxu0 0
          %665 = vmatprep.subr.bf16.mxu0 0
          %666 = vmatpush1.bf16.msra.mxu0 0
          %667 = vmatprep.subr.bf16.mxu0 0
          %668 = vmatpush1.bf16.msra.mxu0 0
          %669 = vmatprep.subr.bf16.mxu0 0
          %670 = vmatpush1.bf16.msra.mxu0 0
          %671 = vmatprep.subr.bf16.mxu0 0
          %672 = vmatpush1.bf16.msra.mxu0 0
          %673 = vmatprep.subr.bf16.mxu0 0
          %674 = vmatpush1.bf16.msra.mxu0 0
          %675 = vmatprep.subr.bf16.mxu0 0
          %676 = vmatpush1.bf16.msra.mxu0 0
          %677 = vmatprep.mubr.bf16.mxu0 0
          %678 = vmatmul.mubr.bf16.gmra.mrb[0].mxu0 %v402
          %v679 = vpop.f32.mrb[0].mxu0
          %v680 = vadd.f32 0.0, %v679
          %v681 = vpop.f32.mrb[0].mxu0
          %v682 = vpop.f32.mrb[0].mxu0
          %v683 = vpop.f32.mrb[0].mxu0
          %684 = vdwg.mxu0
          %v685 = vpack.c.bf16 %v680, %v680
          %s686 = scalar_lea.vmem [#allocation2], 8
          %687 = vst.msk [vmem:[%s686] sm:$0xf] %vm445, %v685
          %s688 = scalar_lea.vmem %s6, 32
          %v689 = vld [vmem:[%s688] sm:$0xf]
          %v690 = vld [vmem:[%s688 + $0x4] sm:$0xf]
          %v691 = vld [vmem:[%s688 + $0x8] sm:$0xf]
          %v692 = vld [vmem:[%s688 + $0xc] sm:$0xf]
          %v697 = vunpack.c.l.b16 %v689
          %v698 = vunpack.c.l.b16 %v690
          %v699 = vunpack.c.l.b16 %v691
          %v700 = vunpack.c.l.b16 %v692
          %v701 = vpack.c.b16 %v698, %v697
          %v702 = vpack.c.b16 %v700, %v699
          %705 = vmatprep.subr.bf16.mxu0 0
          %706 = vmatpush1.bf16.msra.mxu0 %v701
          %707 = vmatprep.subr.bf16.mxu0 0
          %708 = vmatpush1.bf16.msra.mxu0 %v702
          %709 = vmatprep.subr.bf16.mxu0 0
          %710 = vmatpush1.bf16.msra.mxu0 0
          %711 = vmatprep.subr.bf16.mxu0 0
          %712 = vmatpush1.bf16.msra.mxu0 0
          %713 = vmatprep.subr.bf16.mxu0 0
          %714 = vmatpush1.bf16.msra.mxu0 0
          %715 = vmatprep.subr.bf16.mxu0 0
          %716 = vmatpush1.bf16.msra.mxu0 0
          %717 = vmatprep.subr.bf16.mxu0 0
          %718 = vmatpush1.bf16.msra.mxu0 0
          %719 = vmatprep.subr.bf16.mxu0 0
          %720 = vmatpush1.bf16.msra.mxu0 0
          %721 = vmatprep.subr.bf16.mxu0 0
          %722 = vmatpush1.bf16.msra.mxu0 0
          %723 = vmatprep.subr.bf16.mxu0 0
          %724 = vmatpush1.bf16.msra.mxu0 0
          %725 = vmatprep.subr.bf16.mxu0 0
          %726 = vmatpush1.bf16.msra.mxu0 0
          %727 = vmatprep.subr.bf16.mxu0 0
          %728 = vmatpush1.bf16.msra.mxu0 0
          %729 = vmatprep.subr.bf16.mxu0 0
          %730 = vmatpush1.bf16.msra.mxu0 0
          %731 = vmatprep.subr.bf16.mxu0 0
          %732 = vmatpush1.bf16.msra.mxu0 0
          %733 = vmatprep.subr.bf16.mxu0 0
          %734 = vmatpush1.bf16.msra.mxu0 0
          %735 = vmatprep.subr.bf16.mxu0 0
          %736 = vmatpush1.bf16.msra.mxu0 0
          %737 = vmatprep.mubr.bf16.mxu0 0
          %738 = vmatmul.mubr.bf16.gmra.mrb[0].mxu0 %v464
          %v739 = vpop.f32.mrb[0].mxu0
          %v740 = vadd.f32 0.0, %v739
          %v741 = vpop.f32.mrb[0].mxu0
          %v742 = vpop.f32.mrb[0].mxu0
          %v743 = vpop.f32.mrb[0].mxu0
          %744 = vdwg.mxu0
          %v745 = vpack.c.bf16 %v740, %v740
          %s746 = scalar_lea.vmem [#allocation3], 8
          %747 = vst.msk [vmem:[%s746] sm:$0xf] %vm445, %v745
          %s748 = scalar_lea.vmem %s5, 48
          %v749 = vld [vmem:[%s748] sm:$0xf]
          %v750 = vld [vmem:[%s748 + $0x4] sm:$0xf]
          %v751 = vld [vmem:[%s748 + $0x8] sm:$0xf]
          %v752 = vld [vmem:[%s748 + $0xc] sm:$0xf]
          %v757 = vunpack.c.l.b16 %v749
          %v758 = vunpack.c.l.b16 %v750
          %v759 = vunpack.c.l.b16 %v751
          %v760 = vunpack.c.l.b16 %v752
          %v761 = vpack.c.b16 %v758, %v757
          %v762 = vpack.c.b16 %v760, %v759
          %765 = vmatprep.subr.bf16.mxu0 0
          %766 = vmatpush1.bf16.msra.mxu0 %v761
          %767 = vmatprep.subr.bf16.mxu0 0
          %768 = vmatpush1.bf16.msra.mxu0 %v762
          %769 = vmatprep.subr.bf16.mxu0 0
          %770 = vmatpush1.bf16.msra.mxu0 0
          %771 = vmatprep.subr.bf16.mxu0 0
          %772 = vmatpush1.bf16.msra.mxu0 0
          %773 = vmatprep.subr.bf16.mxu0 0
          %774 = vmatpush1.bf16.msra.mxu0 0
          %775 = vmatprep.subr.bf16.mxu0 0
          %776 = vmatpush1.bf16.msra.mxu0 0
          %777 = vmatprep.subr.bf16.mxu0 0
          %778 = vmatpush1.bf16.msra.mxu0 0
          %779 = vmatprep.subr.bf16.mxu0 0
          %780 = vmatpush1.bf16.msra.mxu0 0
          %781 = vmatprep.subr.bf16.mxu0 0
          %782 = vmatpush1.bf16.msra.mxu0 0
          %783 = vmatprep.subr.bf16.mxu0 0
          %784 = vmatpush1.bf16.msra.mxu0 0
          %785 = vmatprep.subr.bf16.mxu0 0
          %786 = vmatpush1.bf16.msra.mxu0 0
          %787 = vmatprep.subr.bf16.mxu0 0
          %788 = vmatpush1.bf16.msra.mxu0 0
          %789 = vmatprep.subr.bf16.mxu0 0
          %790 = vmatpush1.bf16.msra.mxu0 0
          %791 = vmatprep.subr.bf16.mxu0 0
          %792 = vmatpush1.bf16.msra.mxu0 0
          %793 = vmatprep.subr.bf16.mxu0 0
          %794 = vmatpush1.bf16.msra.mxu0 0
          %795 = vmatprep.subr.bf16.mxu0 0
          %796 = vmatpush1.bf16.msra.mxu0 0
          %797 = vmatprep.mubr.bf16.mxu0 0
          %798 = vmatmul.mubr.bf16.gmra.mrb[0].mxu0 %v402
          %v799 = vpop.f32.mrb[0].mxu0
          %v800 = vadd.f32 0.0, %v799
          %v801 = vpop.f32.mrb[0].mxu0
          %v802 = vpop.f32.mrb[0].mxu0
          %v803 = vpop.f32.mrb[0].mxu0
          %804 = vdwg.mxu0
          %v805 = vpack.c.bf16 %v800, %v800
          %s806 = scalar_lea.vmem [#allocation2], 12
          %807 = vst.msk [vmem:[%s806] sm:$0xf] %vm445, %v805
          %s808 = scalar_lea.vmem %s6, 48
          %v809 = vld [vmem:[%s808] sm:$0xf]
          %v810 = vld [vmem:[%s808 + $0x4] sm:$0xf]
          %v811 = vld [vmem:[%s808 + $0x8] sm:$0xf]
          %v812 = vld [vmem:[%s808 + $0xc] sm:$0xf]
          %v817 = vunpack.c.l.b16 %v809
          %v818 = vunpack.c.l.b16 %v810
          %v819 = vunpack.c.l.b16 %v811
          %v820 = vunpack.c.l.b16 %v812
          %v821 = vpack.c.b16 %v818, %v817
          %v822 = vpack.c.b16 %v820, %v819
          %825 = vmatprep.subr.bf16.mxu0 0
          %826 = vmatpush1.bf16.msra.mxu0 %v821
          %827 = vmatprep.subr.bf16.mxu0 0
          %828 = vmatpush1.bf16.msra.mxu0 %v822
          %829 = vmatprep.subr.bf16.mxu0 0
          %830 = vmatpush1.bf16.msra.mxu0 0
          %831 = vmatprep.subr.bf16.mxu0 0
          %832 = vmatpush1.bf16.msra.mxu0 0
          %833 = vmatprep.subr.bf16.mxu0 0
          %834 = vmatpush1.bf16.msra.mxu0 0
          %835 = vmatprep.subr.bf16.mxu0 0
          %836 = vmatpush1.bf16.msra.mxu0 0
          %837 = vmatprep.subr.bf16.mxu0 0
          %838 = vmatpush1.bf16.msra.mxu0 0
          %839 = vmatprep.subr.bf16.mxu0 0
          %840 = vmatpush1.bf16.msra.mxu0 0
          %841 = vmatprep.subr.bf16.mxu0 0
          %842 = vmatpush1.bf16.msra.mxu0 0
          %843 = vmatprep.subr.bf16.mxu0 0
          %844 = vmatpush1.bf16.msra.mxu0 0
          %845 = vmatprep.subr.bf16.mxu0 0
          %846 = vmatpush1.bf16.msra.mxu0 0
          %847 = vmatprep.subr.bf16.mxu0 0
          %848 = vmatpush1.bf16.msra.mxu0 0
          %849 = vmatprep.subr.bf16.mxu0 0
          %850 = vmatpush1.bf16.msra.mxu0 0
          %851 = vmatprep.subr.bf16.mxu0 0
          %852 = vmatpush1.bf16.msra.mxu0 0
          %853 = vmatprep.subr.bf16.mxu0 0
          %854 = vmatpush1.bf16.msra.mxu0 0
          %855 = vmatprep.subr.bf16.mxu0 0
          %856 = vmatpush1.bf16.msra.mxu0 0
          %857 = vmatprep.mubr.bf16.mxu0 0
          %858 = vmatmul.mubr.bf16.gmra.mrb[0].mxu0 %v464
          %v859 = vpop.f32.mrb[0].mxu0
          %v860 = vadd.f32 0.0, %v859
          %v861 = vpop.f32.mrb[0].mxu0
          %v862 = vpop.f32.mrb[0].mxu0
          %v863 = vpop.f32.mrb[0].mxu0
          %864 = vdwg.mxu0
          %v865 = vpack.c.bf16 %v860, %v860
          %s866 = scalar_lea.vmem [#allocation3], 12
          %867 = vst.msk [vmem:[%s866] sm:$0xf] %vm445, %v865
        $region56: #{tpu_custom_call.1} parent=51 // pred_fallthru
          _
        %v868 = vld [vmem:[%s364] sm:$0xf]
        %v869 = vld [vmem:[%s4] sm:$0xf]
        %v870 = vld [vmem:[%s4 + $0x4] sm:$0xf]
        %v871 = vld [vmem:[%s4 + $0x8] sm:$0xf]
        %v872 = vld [vmem:[%s4 + $0xc] sm:$0xf]
        %v877 = vunpack.c.l.b16 %v869
        %v878 = vunpack.c.l.b16 %v870
        %v879 = vunpack.c.l.b16 %v871
        %v880 = vunpack.c.l.b16 %v872
        %v881 = vpack.c.b16 %v878, %v877
        %v882 = vpack.c.b16 %v880, %v879
        %vm885 = vcmask 261120
        %v887 = vsel %vm885, %v868, 0
        %889 = vmatprep.subr.bf16.mxu0 0
        %890 = vmatpush1.bf16.msra.mxu0 %v881
        %891 = vmatprep.subr.bf16.mxu0 0
        %892 = vmatpush1.bf16.msra.mxu0 %v882
        %893 = vmatprep.subr.bf16.mxu0 0
        %894 = vmatpush1.bf16.msra.mxu0 0
        %895 = vmatprep.subr.bf16.mxu0 0
        %896 = vmatpush1.bf16.msra.mxu0 0
        %897 = vmatprep.subr.bf16.mxu0 0
        %898 = vmatpush1.bf16.msra.mxu0 0
        %899 = vmatprep.subr.bf16.mxu0 0
        %900 = vmatpush1.bf16.msra.mxu0 0
        %901 = vmatprep.subr.bf16.mxu0 0
        %902 = vmatpush1.bf16.msra.mxu0 0
        %903 = vmatprep.subr.bf16.mxu0 0
        %904 = vmatpush1.bf16.msra.mxu0 0
        %905 = vmatprep.subr.bf16.mxu0 0
        %906 = vmatpush1.bf16.msra.mxu0 0
        %907 = vmatprep.subr.bf16.mxu0 0
        %908 = vmatpush1.bf16.msra.mxu0 0
        %909 = vmatprep.subr.bf16.mxu0 0
        %910 = vmatpush1.bf16.msra.mxu0 0
        %911 = vmatprep.subr.bf16.mxu0 0
        %912 = vmatpush1.bf16.msra.mxu0 0
        %913 = vmatprep.subr.bf16.mxu0 0
        %914 = vmatpush1.bf16.msra.mxu0 0
        %915 = vmatprep.subr.bf16.mxu0 0
        %916 = vmatpush1.bf16.msra.mxu0 0
        %917 = vmatprep.subr.bf16.mxu0 0
        %918 = vmatpush1.bf16.msra.mxu0 0
        %919 = vmatprep.subr.bf16.mxu0 0
        %920 = vmatpush1.bf16.msra.mxu0 0
        %921 = vmatprep.mubr.bf16.mxu0 0
        %922 = vmatmul.mubr.bf16.gmra.mrb[0].mxu0 %v887
        %v923 = vpop.f32.mrb[0].mxu0
        %v924 = vadd.f32 0.0, %v923
        %v925 = vpop.f32.mrb[0].mxu0
        %v926 = vpop.f32.mrb[0].mxu0
        %v927 = vpop.f32.mrb[0].mxu0
        %928 = vdwg.mxu0
        %v929 = vpack.c.bf16 %v924, %v924
        %vm930 = vcmask 60416
        %931 = vst.msk [vmem:[#allocation4] sm:$0xf] %vm930, %v929
        %s932 = scalar_lea.vmem %s4, 16
        %v933 = vld [vmem:[%s932] sm:$0xf]
        %v934 = vld [vmem:[%s932 + $0x4] sm:$0xf]
        %v935 = vld [vmem:[%s932 + $0x8] sm:$0xf]
        %v936 = vld [vmem:[%s932 + $0xc] sm:$0xf]
        %v941 = vunpack.c.l.b16 %v933
        %v942 = vunpack.c.l.b16 %v934
        %v943 = vunpack.c.l.b16 %v935
        %v944 = vunpack.c.l.b16 %v936
        %v945 = vpack.c.b16 %v942, %v941
        %v946 = vpack.c.b16 %v944, %v943
        %949 = vmatprep.subr.bf16.mxu0 0
        %950 = vmatpush1.bf16.msra.mxu0 %v945
        %951 = vmatprep.subr.bf16.mxu0 0
        %952 = vmatpush1.bf16.msra.mxu0 %v946
        %953 = vmatprep.subr.bf16.mxu0 0
        %954 = vmatpush1.bf16.msra.mxu0 0
        %955 = vmatprep.subr.bf16.mxu0 0
        %956 = vmatpush1.bf16.msra.mxu0 0
        %957 = vmatprep.subr.bf16.mxu0 0
        %958 = vmatpush1.bf16.msra.mxu0 0
        %959 = vmatprep.subr.bf16.mxu0 0
        %960 = vmatpush1.bf16.msra.mxu0 0
        %961 = vmatprep.subr.bf16.mxu0 0
        %962 = vmatpush1.bf16.msra.mxu0 0
        %963 = vmatprep.subr.bf16.mxu0 0
        %964 = vmatpush1.bf16.msra.mxu0 0
        %965 = vmatprep.subr.bf16.mxu0 0
        %966 = vmatpush1.bf16.msra.mxu0 0
        %967 = vmatprep.subr.bf16.mxu0 0
        %968 = vmatpush1.bf16.msra.mxu0 0
        %969 = vmatprep.subr.bf16.mxu0 0
        %970 = vmatpush1.bf16.msra.mxu0 0
        %971 = vmatprep.subr.bf16.mxu0 0
        %972 = vmatpush1.bf16.msra.mxu0 0
        %973 = vmatprep.subr.bf16.mxu0 0
        %974 = vmatpush1.bf16.msra.mxu0 0
        %975 = vmatprep.subr.bf16.mxu0 0
        %976 = vmatpush1.bf16.msra.mxu0 0
        %977 = vmatprep.subr.bf16.mxu0 0
        %978 = vmatpush1.bf16.msra.mxu0 0
        %979 = vmatprep.subr.bf16.mxu0 0
        %980 = vmatpush1.bf16.msra.mxu0 0
        %981 = vmatprep.mubr.bf16.mxu0 0
        %982 = vmatmul.mubr.bf16.gmra.mrb[0].mxu0 %v887
        %v983 = vpop.f32.mrb[0].mxu0
        %v984 = vadd.f32 0.0, %v983
        %v985 = vpop.f32.mrb[0].mxu0
        %v986 = vpop.f32.mrb[0].mxu0
        %v987 = vpop.f32.mrb[0].mxu0
        %988 = vdwg.mxu0
        %v989 = vpack.c.bf16 %v984, %v984
        %s990 = scalar_lea.vmem [#allocation4], 4
        %991 = vst.msk [vmem:[%s990] sm:$0xf] %vm930, %v989
        %s992 = scalar_lea.vmem %s4, 32
        %v993 = vld [vmem:[%s992] sm:$0xf]
        %v994 = vld [vmem:[%s992 + $0x4] sm:$0xf]
        %v995 = vld [vmem:[%s992 + $0x8] sm:$0xf]
        %v996 = vld [vmem:[%s992 + $0xc] sm:$0xf]
        %v1001 = vunpack.c.l.b16 %v993
        %v1002 = vunpack.c.l.b16 %v994
        %v1003 = vunpack.c.l.b16 %v995
        %v1004 = vunpack.c.l.b16 %v996
        %v1005 = vpack.c.b16 %v1002, %v1001
        %v1006 = vpack.c.b16 %v1004, %v1003
        %1009 = vmatprep.subr.bf16.mxu0 0
        %1010 = vmatpush1.bf16.msra.mxu0 %v1005
        %1011 = vmatprep.subr.bf16.mxu0 0
        %1012 = vmatpush1.bf16.msra.mxu0 %v1006
        %1013 = vmatprep.subr.bf16.mxu0 0
        %1014 = vmatpush1.bf16.msra.mxu0 0
        %1015 = vmatprep.subr.bf16.mxu0 0
        %1016 = vmatpush1.bf16.msra.mxu0 0
        %1017 = vmatprep.subr.bf16.mxu0 0
        %1018 = vmatpush1.bf16.msra.mxu0 0
        %1019 = vmatprep.subr.bf16.mxu0 0
        %1020 = vmatpush1.bf16.msra.mxu0 0
        %1021 = vmatprep.subr.bf16.mxu0 0
        %1022 = vmatpush1.bf16.msra.mxu0 0
        %1023 = vmatprep.subr.bf16.mxu0 0
        %1024 = vmatpush1.bf16.msra.mxu0 0
        %1025 = vmatprep.subr.bf16.mxu0 0
        %1026 = vmatpush1.bf16.msra.mxu0 0
        %1027 = vmatprep.subr.bf16.mxu0 0
        %1028 = vmatpush1.bf16.msra.mxu0 0
        %1029 = vmatprep.subr.bf16.mxu0 0
        %1030 = vmatpush1.bf16.msra.mxu0 0
        %1031 = vmatprep.subr.bf16.mxu0 0
        %1032 = vmatpush1.bf16.msra.mxu0 0
        %1033 = vmatprep.subr.bf16.mxu0 0
        %1034 = vmatpush1.bf16.msra.mxu0 0
        %1035 = vmatprep.subr.bf16.mxu0 0
        %1036 = vmatpush1.bf16.msra.mxu0 0
        %1037 = vmatprep.subr.bf16.mxu0 0
        %1038 = vmatpush1.bf16.msra.mxu0 0
        %1039 = vmatprep.subr.bf16.mxu0 0
        %1040 = vmatpush1.bf16.msra.mxu0 0
        %1041 = vmatprep.mubr.bf16.mxu0 0
        %1042 = vmatmul.mubr.bf16.gmra.mrb[0].mxu0 %v887
        %v1043 = vpop.f32.mrb[0].mxu0
        %v1044 = vadd.f32 0.0, %v1043
        %v1045 = vpop.f32.mrb[0].mxu0
        %v1046 = vpop.f32.mrb[0].mxu0
        %v1047 = vpop.f32.mrb[0].mxu0
        %1048 = vdwg.mxu0
        %v1049 = vpack.c.bf16 %v1044, %v1044
        %s1050 = scalar_lea.vmem [#allocation4], 8
        %1051 = vst.msk [vmem:[%s1050] sm:$0xf] %vm930, %v1049
        %s1052 = scalar_lea.vmem %s4, 48
        %v1053 = vld [vmem:[%s1052] sm:$0xf]
        %v1054 = vld [vmem:[%s1052 + $0x4] sm:$0xf]
        %v1055 = vld [vmem:[%s1052 + $0x8] sm:$0xf]
        %v1056 = vld [vmem:[%s1052 + $0xc] sm:$0xf]
        %v1061 = vunpack.c.l.b16 %v1053
        %v1062 = vunpack.c.l.b16 %v1054
        %v1063 = vunpack.c.l.b16 %v1055
        %v1064 = vunpack.c.l.b16 %v1056
        %v1065 = vpack.c.b16 %v1062, %v1061
        %v1066 = vpack.c.b16 %v1064, %v1063
        %1069 = vmatprep.subr.bf16.mxu0 0
        %1070 = vmatpush1.bf16.msra.mxu0 %v1065
        %1071 = vmatprep.subr.bf16.mxu0 0
        %1072 = vmatpush1.bf16.msra.mxu0 %v1066
        %1073 = vmatprep.subr.bf16.mxu0 0
        %1074 = vmatpush1.bf16.msra.mxu0 0
        %1075 = vmatprep.subr.bf16.mxu0 0
        %1076 = vmatpush1.bf16.msra.mxu0 0
        %1077 = vmatprep.subr.bf16.mxu0 0
        %1078 = vmatpush1.bf16.msra.mxu0 0
        %1079 = vmatprep.subr.bf16.mxu0 0
        %1080 = vmatpush1.bf16.msra.mxu0 0
        %1081 = vmatprep.subr.bf16.mxu0 0
        %1082 = vmatpush1.bf16.msra.mxu0 0
        %1083 = vmatprep.subr.bf16.mxu0 0
        %1084 = vmatpush1.bf16.msra.mxu0 0
        %1085 = vmatprep.subr.bf16.mxu0 0
        %1086 = vmatpush1.bf16.msra.mxu0 0
        %1087 = vmatprep.subr.bf16.mxu0 0
        %1088 = vmatpush1.bf16.msra.mxu0 0
        %1089 = vmatprep.subr.bf16.mxu0 0
        %1090 = vmatpush1.bf16.msra.mxu0 0
        %1091 = vmatprep.subr.bf16.mxu0 0
        %1092 = vmatpush1.bf16.msra.mxu0 0
        %1093 = vmatprep.subr.bf16.mxu0 0
        %1094 = vmatpush1.bf16.msra.mxu0 0
        %1095 = vmatprep.subr.bf16.mxu0 0
        %1096 = vmatpush1.bf16.msra.mxu0 0
        %1097 = vmatprep.subr.bf16.mxu0 0
        %1098 = vmatpush1.bf16.msra.mxu0 0
        %1099 = vmatprep.subr.bf16.mxu0 0
        %1100 = vmatpush1.bf16.msra.mxu0 0
        %1101 = vmatprep.mubr.bf16.mxu0 0
        %1102 = vmatmul.mubr.bf16.gmra.mrb[0].mxu0 %v887
        %v1103 = vpop.f32.mrb[0].mxu0
        %v1104 = vadd.f32 0.0, %v1103
        %v1105 = vpop.f32.mrb[0].mxu0
        %v1106 = vpop.f32.mrb[0].mxu0
        %v1107 = vpop.f32.mrb[0].mxu0
        %1108 = vdwg.mxu0
        %v1109 = vpack.c.bf16 %v1104, %v1104
        %s1110 = scalar_lea.vmem [#allocation4], 12
        %1111 = vst.msk [vmem:[%s1110] sm:$0xf] %vm930, %v1109
        %v1112 = vld [vmem:[#allocation4] sm:$0xf]
        %v1113 = vld [vmem:[#allocation4 + $0x4] sm:$0xf]
        %v1114 = vld [vmem:[#allocation4 + $0x8] sm:$0xf]
        %v1115 = vld [vmem:[#allocation4 + $0xc] sm:$0xf]
        %v1116 = vld [vmem:[#allocation2] sm:$0xf]
        %v1117 = vld [vmem:[#allocation2 + $0x4] sm:$0xf]
        %v1118 = vld [vmem:[#allocation2 + $0x8] sm:$0xf]
        %v1119 = vld [vmem:[#allocation2 + $0xc] sm:$0xf]
        %v1120 = vld [vmem:[#allocation3] sm:$0xf]
        %v1121 = vld [vmem:[#allocation3 + $0x4] sm:$0xf]
        %v1122 = vld [vmem:[#allocation3 + $0x8] sm:$0xf]
        %v1123 = vld [vmem:[#allocation3 + $0xc] sm:$0xf]
        %v1124 = vld [vmem:[%s376] sm:$0xf]
        %v1125 = vunpack.c.l.bf16 %v1124
        %vm1126 = vcmask 64512
        %v1128 = vsel %vm1126, %v1112, 0
        %v1131 = vsel %vm1126, %v1116, 0
        %1133 = vmatprep.subr.bf16.mxu0 0
        %1134 = vmatpush1.bf16.xpose.msra.mxu0 %v1131
        %1135 = vmatprep.subr.bf16.mxu0 0
        %1136 = vmatpush1.bf16.xpose.msra.mxu0 0
        %1137 = vmatprep.subr.bf16.mxu0 0
        %1138 = vmatpush1.bf16.xpose.msra.mxu0 0
        %1139 = vmatprep.subr.bf16.mxu0 0
        %1140 = vmatpush1.bf16.xpose.msra.mxu0 0
        %1141 = vmatprep.subr.bf16.mxu0 0
        %1142 = vmatpush1.bf16.xpose.msra.mxu0 0
        %1143 = vmatprep.subr.bf16.mxu0 0
        %1144 = vmatpush1.bf16.xpose.msra.mxu0 0
        %1145 = vmatprep.subr.bf16.mxu0 0
        %1146 = vmatpush1.bf16.xpose.msra.mxu0 0
        %1147 = vmatprep.subr.bf16.mxu0 0
        %1148 = vmatpush1.bf16.xpose.msra.mxu0 0
        %1149 = vmatprep.subr.bf16.mxu0 0
        %1150 = vmatpush1.bf16.xpose.msra.mxu0 0
        %1151 = vmatprep.subr.bf16.mxu0 0
        %1152 = vmatpush1.bf16.xpose.msra.mxu0 0
        %1153 = vmatprep.subr.bf16.mxu0 0
        %1154 = vmatpush1.bf16.xpose.msra.mxu0 0
        %1155 = vmatprep.subr.bf16.mxu0 0
        %1156 = vmatpush1.bf16.xpose.msra.mxu0 0
        %1157 = vmatprep.subr.bf16.mxu0 0
        %1158 = vmatpush1.bf16.xpose.msra.mxu0 0
        %1159 = vmatprep.subr.bf16.mxu0 0
        %1160 = vmatpush1.bf16.xpose.msra.mxu0 0
        %1161 = vmatprep.subr.bf16.mxu0 0
        %1162 = vmatpush1.bf16.xpose.msra.mxu0 0
        %1163 = vmatprep.subr.bf16.mxu0 0
        %1164 = vmatpush1.bf16.xpose.msra.mxu0 0
        %1165 = vmatprep.mubr.bf16.mxu0 0
        %1166 = vmatmul.mubr.bf16.gmra.mrb[0].mxu0 %v1128
        %v1167 = vpop.f32.mrb[0].mxu0
        %v1168 = vadd.f32 %v1125, %v1167
        %v1169 = vpop.f32.mrb[0].mxu0
        %v1170 = vpop.f32.mrb[0].mxu0
        %v1171 = vpop.f32.mrb[0].mxu0
        %1172 = vdwg.mxu0
        %v1174 = vsel %vm1126, %v1113, 0
        %v1177 = vsel %vm1126, %v1117, 0
        %1179 = vmatprep.subr.bf16.mxu0 0
        %1180 = vmatpush1.bf16.xpose.msra.mxu0 %v1177
        %1181 = vmatprep.subr.bf16.mxu0 0
        %1182 = vmatpush1.bf16.xpose.msra.mxu0 0
        %1183 = vmatprep.subr.bf16.mxu0 0
        %1184 = vmatpush1.bf16.xpose.msra.mxu0 0
        %1185 = vmatprep.subr.bf16.mxu0 0
        %1186 = vmatpush1.bf16.xpose.msra.mxu0 0
        %1187 = vmatprep.subr.bf16.mxu0 0
        %1188 = vmatpush1.bf16.xpose.msra.mxu0 0
        %1189 = vmatprep.subr.bf16.mxu0 0
        %1190 = vmatpush1.bf16.xpose.msra.mxu0 0
        %1191 = vmatprep.subr.bf16.mxu0 0
        %1192 = vmatpush1.bf16.xpose.msra.mxu0 0
        %1193 = vmatprep.subr.bf16.mxu0 0
        %1194 = vmatpush1.bf16.xpose.msra.mxu0 0
        %1195 = vmatprep.subr.bf16.mxu0 0
        %1196 = vmatpush1.bf16.xpose.msra.mxu0 0
        %1197 = vmatprep.subr.bf16.mxu0 0
        %1198 = vmatpush1.bf16.xpose.msra.mxu0 0
        %1199 = vmatprep.subr.bf16.mxu0 0
        %1200 = vmatpush1.bf16.xpose.msra.mxu0 0
        %1201 = vmatprep.subr.bf16.mxu0 0
        %1202 = vmatpush1.bf16.xpose.msra.mxu0 0
        %1203 = vmatprep.subr.bf16.mxu0 0
        %1204 = vmatpush1.bf16.xpose.msra.mxu0 0
        %1205 = vmatprep.subr.bf16.mxu0 0
        %1206 = vmatpush1.bf16.xpose.msra.mxu0 0
        %1207 = vmatprep.subr.bf16.mxu0 0
        %1208 = vmatpush1.bf16.xpose.msra.mxu0 0
        %1209 = vmatprep.subr.bf16.mxu0 0
        %1210 = vmatpush1.bf16.xpose.msra.mxu0 0
        %1211 = vmatprep.mubr.bf16.mxu0 0
        %1212 = vmatmul.mubr.bf16.gmra.mrb[0].mxu0 %v1174
        %v1213 = vpop.f32.mrb[0].mxu0
        %v1214 = vadd.f32 %v1125, %v1213
        %v1215 = vpop.f32.mrb[0].mxu0
        %v1216 = vpop.f32.mrb[0].mxu0
        %v1217 = vpop.f32.mrb[0].mxu0
        %1218 = vdwg.mxu0
        %v1220 = vsel %vm1126, %v1114, 0
        %v1223 = vsel %vm1126, %v1118, 0
        %1225 = vmatprep.subr.bf16.mxu0 0
        %1226 = vmatpush1.bf16.xpose.msra.mxu0 %v1223
        %1227 = vmatprep.subr.bf16.mxu0 0
        %1228 = vmatpush1.bf16.xpose.msra.mxu0 0
        %1229 = vmatprep.subr.bf16.mxu0 0
        %1230 = vmatpush1.bf16.xpose.msra.mxu0 0
        %1231 = vmatprep.subr.bf16.mxu0 0
        %1232 = vmatpush1.bf16.xpose.msra.mxu0 0
        %1233 = vmatprep.subr.bf16.mxu0 0
        %1234 = vmatpush1.bf16.xpose.msra.mxu0 0
        %1235 = vmatprep.subr.bf16.mxu0 0
        %1236 = vmatpush1.bf16.xpose.msra.mxu0 0
        %1237 = vmatprep.subr.bf16.mxu0 0
        %1238 = vmatpush1.bf16.xpose.msra.mxu0 0
        %1239 = vmatprep.subr.bf16.mxu0 0
        %1240 = vmatpush1.bf16.xpose.msra.mxu0 0
        %1241 = vmatprep.subr.bf16.mxu0 0
        %1242 = vmatpush1.bf16.xpose.msra.mxu0 0
        %1243 = vmatprep.subr.bf16.mxu0 0
        %1244 = vmatpush1.bf16.xpose.msra.mxu0 0
        %1245 = vmatprep.subr.bf16.mxu0 0
        %1246 = vmatpush1.bf16.xpose.msra.mxu0 0
        %1247 = vmatprep.subr.bf16.mxu0 0
        %1248 = vmatpush1.bf16.xpose.msra.mxu0 0
        %1249 = vmatprep.subr.bf16.mxu0 0
        %1250 = vmatpush1.bf16.xpose.msra.mxu0 0
        %1251 = vmatprep.subr.bf16.mxu0 0
        %1252 = vmatpush1.bf16.xpose.msra.mxu0 0
        %1253 = vmatprep.subr.bf16.mxu0 0
        %1254 = vmatpush1.bf16.xpose.msra.mxu0 0
        %1255 = vmatprep.subr.bf16.mxu0 0
        %1256 = vmatpush1.bf16.xpose.msra.mxu0 0
        %1257 = vmatprep.mubr.bf16.mxu0 0
        %1258 = vmatmul.mubr.bf16.gmra.mrb[0].mxu0 %v1220
        %v1259 = vpop.f32.mrb[0].mxu0
        %v1260 = vadd.f32 %v1125, %v1259
        %v1261 = vpop.f32.mrb[0].mxu0
        %v1262 = vpop.f32.mrb[0].mxu0
        %v1263 = vpop.f32.mrb[0].mxu0
        %1264 = vdwg.mxu0
        %v1266 = vsel %vm1126, %v1115, 0
        %v1269 = vsel %vm1126, %v1119, 0
        %1271 = vmatprep.subr.bf16.mxu0 0
        %1272 = vmatpush1.bf16.xpose.msra.mxu0 %v1269
        %1273 = vmatprep.subr.bf16.mxu0 0
        %1274 = vmatpush1.bf16.xpose.msra.mxu0 0
        %1275 = vmatprep.subr.bf16.mxu0 0
        %1276 = vmatpush1.bf16.xpose.msra.mxu0 0
        %1277 = vmatprep.subr.bf16.mxu0 0
        %1278 = vmatpush1.bf16.xpose.msra.mxu0 0
        %1279 = vmatprep.subr.bf16.mxu0 0
        %1280 = vmatpush1.bf16.xpose.msra.mxu0 0
        %1281 = vmatprep.subr.bf16.mxu0 0
        %1282 = vmatpush1.bf16.xpose.msra.mxu0 0
        %1283 = vmatprep.subr.bf16.mxu0 0
        %1284 = vmatpush1.bf16.xpose.msra.mxu0 0
        %1285 = vmatprep.subr.bf16.mxu0 0
        %1286 = vmatpush1.bf16.xpose.msra.mxu0 0
        %1287 = vmatprep.subr.bf16.mxu0 0
        %1288 = vmatpush1.bf16.xpose.msra.mxu0 0
        %1289 = vmatprep.subr.bf16.mxu0 0
        %1290 = vmatpush1.bf16.xpose.msra.mxu0 0
        %1291 = vmatprep.subr.bf16.mxu0 0
        %1292 = vmatpush1.bf16.xpose.msra.mxu0 0
        %1293 = vmatprep.subr.bf16.mxu0 0
        %1294 = vmatpush1.bf16.xpose.msra.mxu0 0
        %1295 = vmatprep.subr.bf16.mxu0 0
        %1296 = vmatpush1.bf16.xpose.msra.mxu0 0
        %1297 = vmatprep.subr.bf16.mxu0 0
        %1298 = vmatpush1.bf16.xpose.msra.mxu0 0
        %1299 = vmatprep.subr.bf16.mxu0 0
        %1300 = vmatpush1.bf16.xpose.msra.mxu0 0
        %1301 = vmatprep.subr.bf16.mxu0 0
        %1302 = vmatpush1.bf16.xpose.msra.mxu0 0
        %1303 = vmatprep.mubr.bf16.mxu0 0
        %1304 = vmatmul.mubr.bf16.gmra.mrb[0].mxu0 %v1266
        %v1305 = vpop.f32.mrb[0].mxu0
        %v1306 = vadd.f32 %v1125, %v1305
        %v1307 = vpop.f32.mrb[0].mxu0
        %v1308 = vpop.f32.mrb[0].mxu0
        %v1309 = vpop.f32.mrb[0].mxu0
        %1310 = vdwg.mxu0
        %v1311 = vsel %vm1126, %v1168, -inf
        %1312 = vmax.xlane.f32.xlu0 %v1311
        %v1313 = vpop.xlane.xlu0 %1312
        %v1314 = vsel %vm1126, %v1214, -inf
        %1315 = vmax.xlane.f32.xlu0 %v1314
        %v1316 = vpop.xlane.xlu0 %1315
        %v1317 = vsel %vm1126, %v1260, -inf
        %1318 = vmax.xlane.f32.xlu0 %v1317
        %v1319 = vpop.xlane.xlu0 %1318
        %v1320 = vsel %vm1126, %v1306, -inf
        %1321 = vmax.xlane.f32.xlu0 %v1320
        %v1322 = vpop.xlane.xlu0 %1321
        %v1323 = vsub.f32 %v1168, %v1313
        %v1324 = vsub.f32 %v1214, %v1316
        %v1325 = vsub.f32 %v1260, %v1319
        %v1326 = vsub.f32 %v1306, %v1322
        %v1327 = vpack.c.bf16 %v1323, %v1323
        %v1328 = vpack.c.bf16 %v1324, %v1324
        %v1329 = vpack.c.bf16 %v1325, %v1325
        %v1330 = vpack.c.bf16 %v1326, %v1326
        %v1332 = vmul.bf16 %v1327, 1069105081
        %v1333 = vpow.bf16.pop %v1332
        %v1335 = vmul.bf16 %v1328, 1069105081
        %v1336 = vpow.bf16.pop %v1335
        %v1338 = vmul.bf16 %v1329, 1069105081
        %v1339 = vpow.bf16.pop %v1338
        %v1341 = vmul.bf16 %v1330, 1069105081
        %v1342 = vpow.bf16.pop %v1341
        %v1343 = vunpack.c.l.bf16 %v1333
        %v1344 = vunpack.c.l.bf16 %v1336
        %v1345 = vunpack.c.l.bf16 %v1339
        %v1346 = vunpack.c.l.bf16 %v1342
        %v1347 = vsel %vm1126, %v1343, 0.0
        %1348 = vadd.xlane.f32.xlu0 %v1347
        %v1349 = vpop.xlane.xlu0 %1348
        %v1350 = vsel %vm1126, %v1344, 0.0
        %1351 = vadd.xlane.f32.xlu0 %v1350
        %v1352 = vpop.xlane.xlu0 %1351
        %v1353 = vsel %vm1126, %v1345, 0.0
        %1354 = vadd.xlane.f32.xlu0 %v1353
        %v1355 = vpop.xlane.xlu0 %1354
        %v1356 = vsel %vm1126, %v1346, 0.0
        %1357 = vadd.xlane.f32.xlu0 %v1356
        %v1358 = vpop.xlane.xlu0 %1357
        %v1359 = vrcp.pop %v1349
        %v1360 = vrcp.pop %v1352
        %v1361 = vrcp.pop %v1355
        %v1362 = vrcp.pop %v1358
        %v1363 = vpack.c.bf16 %v1359, %v1359
        %v1364 = vpack.c.bf16 %v1360, %v1360
        %v1365 = vpack.c.bf16 %v1361, %v1361
        %v1366 = vpack.c.bf16 %v1362, %v1362
        %v1367 = vmul.bf16 %v1333, %v1363
        %v1368 = vmul.bf16 %v1336, %v1364
        %v1369 = vmul.bf16 %v1339, %v1365
        %v1370 = vmul.bf16 %v1342, %v1366
        %v1372 = vsel %vm1126, %v1367, 0
        %vm1374 = vcmask 1043456
        %v1376 = vsel %vm1374, %v1120, 0
        %1378 = vmatprep.subr.bf16.mxu0 0
        %1379 = vmatpush1.bf16.msra.mxu0 %v1376
        %1380 = vmatprep.subr.bf16.mxu0 0
        %1381 = vmatpush1.bf16.msra.mxu0 0
        %1382 = vmatprep.subr.bf16.mxu0 0
        %1383 = vmatpush1.bf16.msra.mxu0 0
        %1384 = vmatprep.subr.bf16.mxu0 0
        %1385 = vmatpush1.bf16.msra.mxu0 0
        %1386 = vmatprep.subr.bf16.mxu0 0
        %1387 = vmatpush1.bf16.msra.mxu0 0
        %1388 = vmatprep.subr.bf16.mxu0 0
        %1389 = vmatpush1.bf16.msra.mxu0 0
        %1390 = vmatprep.subr.bf16.mxu0 0
        %1391 = vmatpush1.bf16.msra.mxu0 0
        %1392 = vmatprep.subr.bf16.mxu0 0
        %1393 = vmatpush1.bf16.msra.mxu0 0
        %1394 = vmatprep.subr.bf16.mxu0 0
        %1395 = vmatpush1.bf16.msra.mxu0 0
        %1396 = vmatprep.subr.bf16.mxu0 0
        %1397 = vmatpush1.bf16.msra.mxu0 0
        %1398 = vmatprep.subr.bf16.mxu0 0
        %1399 = vmatpush1.bf16.msra.mxu0 0
        %1400 = vmatprep.subr.bf16.mxu0 0
        %1401 = vmatpush1.bf16.msra.mxu0 0
        %1402 = vmatprep.subr.bf16.mxu0 0
        %1403 = vmatpush1.bf16.msra.mxu0 0
        %1404 = vmatprep.subr.bf16.mxu0 0
        %1405 = vmatpush1.bf16.msra.mxu0 0
        %1406 = vmatprep.subr.bf16.mxu0 0
        %1407 = vmatpush1.bf16.msra.mxu0 0
        %1408 = vmatprep.subr.bf16.mxu0 0
        %1409 = vmatpush1.bf16.msra.mxu0 0
        %1410 = vmatprep.mubr.bf16.mxu0 0
        %1411 = vmatmul.mubr.bf16.gmra.mrb[0].mxu0 %v1372
        %v1412 = vpop.f32.mrb[0].mxu0
        %v1413 = vadd.f32 0.0, %v1412
        %v1414 = vpop.f32.mrb[0].mxu0
        %v1415 = vpop.f32.mrb[0].mxu0
        %v1416 = vpop.f32.mrb[0].mxu0
        %1417 = vdwg.mxu0
        %v1419 = vsel %vm1126, %v1368, 0
        %v1422 = vsel %vm1374, %v1121, 0
        %1424 = vmatprep.subr.bf16.mxu0 0
        %1425 = vmatpush1.bf16.msra.mxu0 %v1422
        %1426 = vmatprep.subr.bf16.mxu0 0
        %1427 = vmatpush1.bf16.msra.mxu0 0
        %1428 = vmatprep.subr.bf16.mxu0 0
        %1429 = vmatpush1.bf16.msra.mxu0 0
        %1430 = vmatprep.subr.bf16.mxu0 0
        %1431 = vmatpush1.bf16.msra.mxu0 0
        %1432 = vmatprep.subr.bf16.mxu0 0
        %1433 = vmatpush1.bf16.msra.mxu0 0
        %1434 = vmatprep.subr.bf16.mxu0 0
        %1435 = vmatpush1.bf16.msra.mxu0 0
        %1436 = vmatprep.subr.bf16.mxu0 0
        %1437 = vmatpush1.bf16.msra.mxu0 0
        %1438 = vmatprep.subr.bf16.mxu0 0
        %1439 = vmatpush1.bf16.msra.mxu0 0
        %1440 = vmatprep.subr.bf16.mxu0 0
        %1441 = vmatpush1.bf16.msra.mxu0 0
        %1442 = vmatprep.subr.bf16.mxu0 0
        %1443 = vmatpush1.bf16.msra.mxu0 0
        %1444 = vmatprep.subr.bf16.mxu0 0
        %1445 = vmatpush1.bf16.msra.mxu0 0
        %1446 = vmatprep.subr.bf16.mxu0 0
        %1447 = vmatpush1.bf16.msra.mxu0 0
        %1448 = vmatprep.subr.bf16.mxu0 0
        %1449 = vmatpush1.bf16.msra.mxu0 0
        %1450 = vmatprep.subr.bf16.mxu0 0
        %1451 = vmatpush1.bf16.msra.mxu0 0
        %1452 = vmatprep.subr.bf16.mxu0 0
        %1453 = vmatpush1.bf16.msra.mxu0 0
        %1454 = vmatprep.subr.bf16.mxu0 0
        %1455 = vmatpush1.bf16.msra.mxu0 0
        %1456 = vmatprep.mubr.bf16.mxu0 0
        %1457 = vmatmul.mubr.bf16.gmra.mrb[0].mxu0 %v1419
        %v1458 = vpop.f32.mrb[0].mxu0
        %v1459 = vadd.f32 0.0, %v1458
        %v1460 = vpop.f32.mrb[0].mxu0
        %v1461 = vpop.f32.mrb[0].mxu0
        %v1462 = vpop.f32.mrb[0].mxu0
        %1463 = vdwg.mxu0
        %v1465 = vsel %vm1126, %v1369, 0
        %v1468 = vsel %vm1374, %v1122, 0
        %1470 = vmatprep.subr.bf16.mxu0 0
        %1471 = vmatpush1.bf16.msra.mxu0 %v1468
        %1472 = vmatprep.subr.bf16.mxu0 0
        %1473 = vmatpush1.bf16.msra.mxu0 0
        %1474 = vmatprep.subr.bf16.mxu0 0
        %1475 = vmatpush1.bf16.msra.mxu0 0
        %1476 = vmatprep.subr.bf16.mxu0 0
        %1477 = vmatpush1.bf16.msra.mxu0 0
        %1478 = vmatprep.subr.bf16.mxu0 0
        %1479 = vmatpush1.bf16.msra.mxu0 0
        %1480 = vmatprep.subr.bf16.mxu0 0
        %1481 = vmatpush1.bf16.msra.mxu0 0
        %1482 = vmatprep.subr.bf16.mxu0 0
        %1483 = vmatpush1.bf16.msra.mxu0 0
        %1484 = vmatprep.subr.bf16.mxu0 0
        %1485 = vmatpush1.bf16.msra.mxu0 0
        %1486 = vmatprep.subr.bf16.mxu0 0
        %1487 = vmatpush1.bf16.msra.mxu0 0
        %1488 = vmatprep.subr.bf16.mxu0 0
        %1489 = vmatpush1.bf16.msra.mxu0 0
        %1490 = vmatprep.subr.bf16.mxu0 0
        %1491 = vmatpush1.bf16.msra.mxu0 0
        %1492 = vmatprep.subr.bf16.mxu0 0
        %1493 = vmatpush1.bf16.msra.mxu0 0
        %1494 = vmatprep.subr.bf16.mxu0 0
        %1495 = vmatpush1.bf16.msra.mxu0 0
        %1496 = vmatprep.subr.bf16.mxu0 0
        %1497 = vmatpush1.bf16.msra.mxu0 0
        %1498 = vmatprep.subr.bf16.mxu0 0
        %1499 = vmatpush1.bf16.msra.mxu0 0
        %1500 = vmatprep.subr.bf16.mxu0 0
        %1501 = vmatpush1.bf16.msra.mxu0 0
        %1502 = vmatprep.mubr.bf16.mxu0 0
        %1503 = vmatmul.mubr.bf16.gmra.mrb[0].mxu0 %v1465
        %v1504 = vpop.f32.mrb[0].mxu0
        %v1505 = vadd.f32 0.0, %v1504
        %v1506 = vpop.f32.mrb[0].mxu0
        %v1507 = vpop.f32.mrb[0].mxu0
        %v1508 = vpop.f32.mrb[0].mxu0
        %1509 = vdwg.mxu0
        %v1511 = vsel %vm1126, %v1370, 0
        %v1514 = vsel %vm1374, %v1123, 0
        %1516 = vmatprep.subr.bf16.mxu0 0
        %1517 = vmatpush1.bf16.msra.mxu0 %v1514
        %1518 = vmatprep.subr.bf16.mxu0 0
        %1519 = vmatpush1.bf16.msra.mxu0 0
        %1520 = vmatprep.subr.bf16.mxu0 0
        %1521 = vmatpush1.bf16.msra.mxu0 0
        %1522 = vmatprep.subr.bf16.mxu0 0
        %1523 = vmatpush1.bf16.msra.mxu0 0
        %1524 = vmatprep.subr.bf16.mxu0 0
        %1525 = vmatpush1.bf16.msra.mxu0 0
        %1526 = vmatprep.subr.bf16.mxu0 0
        %1527 = vmatpush1.bf16.msra.mxu0 0
        %1528 = vmatprep.subr.bf16.mxu0 0
        %1529 = vmatpush1.bf16.msra.mxu0 0
        %1530 = vmatprep.subr.bf16.mxu0 0
        %1531 = vmatpush1.bf16.msra.mxu0 0
        %1532 = vmatprep.subr.bf16.mxu0 0
        %1533 = vmatpush1.bf16.msra.mxu0 0
        %1534 = vmatprep.subr.bf16.mxu0 0
        %1535 = vmatpush1.bf16.msra.mxu0 0
        %1536 = vmatprep.subr.bf16.mxu0 0
        %1537 = vmatpush1.bf16.msra.mxu0 0
        %1538 = vmatprep.subr.bf16.mxu0 0
        %1539 = vmatpush1.bf16.msra.mxu0 0
        %1540 = vmatprep.subr.bf16.mxu0 0
        %1541 = vmatpush1.bf16.msra.mxu0 0
        %1542 = vmatprep.subr.bf16.mxu0 0
        %1543 = vmatpush1.bf16.msra.mxu0 0
        %1544 = vmatprep.subr.bf16.mxu0 0
        %1545 = vmatpush1.bf16.msra.mxu0 0
        %1546 = vmatprep.subr.bf16.mxu0 0
        %1547 = vmatpush1.bf16.msra.mxu0 0
        %1548 = vmatprep.mubr.bf16.mxu0 0
        %1549 = vmatmul.mubr.bf16.gmra.mrb[0].mxu0 %v1511
        %v1550 = vpop.f32.mrb[0].mxu0
        %v1551 = vadd.f32 0.0, %v1550
        %v1552 = vpop.f32.mrb[0].mxu0
        %v1553 = vpop.f32.mrb[0].mxu0
        %v1554 = vpop.f32.mrb[0].mxu0
        %1555 = vdwg.mxu0
        %v1556 = vpack.c.bf16 %v1413, %v1413
        %v1557 = vpack.c.bf16 %v1459, %v1459
        %v1558 = vpack.c.bf16 %v1505, %v1505
        %v1559 = vpack.c.bf16 %v1551, %v1551
        %v1560 = vld [vmem:[%s7] sm:$0xf]
        %s1561 = scalar_lea.vmem %s7, 4
        %v1562 = vld [vmem:[%s1561] sm:$0xf]
        %v1564 = vsel %vm1126, %v1557, 0
        %v1567 = vsel %vm1374, %v1562, 0
        %1569 = vmatprep.subr.bf16.mxu0 0
        %1570 = vmatpush1.bf16.msra.mxu0 %v1567
        %1571 = vmatprep.subr.bf16.mxu0 0
        %1572 = vmatpush1.bf16.msra.mxu0 0
        %1573 = vmatprep.subr.bf16.mxu0 0
        %1574 = vmatpush1.bf16.msra.mxu0 0
        %1575 = vmatprep.subr.bf16.mxu0 0
        %1576 = vmatpush1.bf16.msra.mxu0 0
        %1577 = vmatprep.subr.bf16.mxu0 0
        %1578 = vmatpush1.bf16.msra.mxu0 0
        %1579 = vmatprep.subr.bf16.mxu0 0
        %1580 = vmatpush1.bf16.msra.mxu0 0
        %1581 = vmatprep.subr.bf16.mxu0 0
        %1582 = vmatpush1.bf16.msra.mxu0 0
        %1583 = vmatprep.subr.bf16.mxu0 0
        %1584 = vmatpush1.bf16.msra.mxu0 0
        %1585 = vmatprep.subr.bf16.mxu0 0
        %1586 = vmatpush1.bf16.msra.mxu0 0
        %1587 = vmatprep.subr.bf16.mxu0 0
        %1588 = vmatpush1.bf16.msra.mxu0 0
        %1589 = vmatprep.subr.bf16.mxu0 0
        %1590 = vmatpush1.bf16.msra.mxu0 0
        %1591 = vmatprep.subr.bf16.mxu0 0
        %1592 = vmatpush1.bf16.msra.mxu0 0
        %1593 = vmatprep.subr.bf16.mxu0 0
        %1594 = vmatpush1.bf16.msra.mxu0 0
        %1595 = vmatprep.subr.bf16.mxu0 0
        %1596 = vmatpush1.bf16.msra.mxu0 0
        %1597 = vmatprep.subr.bf16.mxu0 0
        %1598 = vmatpush1.bf16.msra.mxu0 0
        %1599 = vmatprep.subr.bf16.mxu0 0
        %1600 = vmatpush1.bf16.msra.mxu0 0
        %1601 = vmatprep.mubr.bf16.mxu0 0
        %1602 = vmatmul.mubr.bf16.gmra.mrb[0].mxu0 %v1564
        %v1603 = vpop.f32.mrb[0].mxu0
        %v1604 = vadd.f32 0.0, %v1603
        %v1605 = vpop.f32.mrb[0].mxu0
        %v1606 = vpop.f32.mrb[0].mxu0
        %v1607 = vpop.f32.mrb[0].mxu0
        %1608 = vdwg.mxu0
        %v1610 = vsel %vm1126, %v1556, 0
        %v1613 = vsel %vm1374, %v1560, 0
        %1615 = vmatprep.subr.bf16.mxu0 0
        %1616 = vmatpush1.bf16.msra.mxu0 %v1613
        %1617 = vmatprep.subr.bf16.mxu0 0
        %1618 = vmatpush1.bf16.msra.mxu0 0
        %1619 = vmatprep.subr.bf16.mxu0 0
        %1620 = vmatpush1.bf16.msra.mxu0 0
        %1621 = vmatprep.subr.bf16.mxu0 0
        %1622 = vmatpush1.bf16.msra.mxu0 0
        %1623 = vmatprep.subr.bf16.mxu0 0
        %1624 = vmatpush1.bf16.msra.mxu0 0
        %1625 = vmatprep.subr.bf16.mxu0 0
        %1626 = vmatpush1.bf16.msra.mxu0 0
        %1627 = vmatprep.subr.bf16.mxu0 0
        %1628 = vmatpush1.bf16.msra.mxu0 0
        %1629 = vmatprep.subr.bf16.mxu0 0
        %1630 = vmatpush1.bf16.msra.mxu0 0
        %1631 = vmatprep.subr.bf16.mxu0 0
        %1632 = vmatpush1.bf16.msra.mxu0 0
        %1633 = vmatprep.subr.bf16.mxu0 0
        %1634 = vmatpush1.bf16.msra.mxu0 0
        %1635 = vmatprep.subr.bf16.mxu0 0
        %1636 = vmatpush1.bf16.msra.mxu0 0
        %1637 = vmatprep.subr.bf16.mxu0 0
        %1638 = vmatpush1.bf16.msra.mxu0 0
        %1639 = vmatprep.subr.bf16.mxu0 0
        %1640 = vmatpush1.bf16.msra.mxu0 0
        %1641 = vmatprep.subr.bf16.mxu0 0
        %1642 = vmatpush1.bf16.msra.mxu0 0
        %1643 = vmatprep.subr.bf16.mxu0 0
        %1644 = vmatpush1.bf16.msra.mxu0 0
        %1645 = vmatprep.subr.bf16.mxu0 0
        %1646 = vmatpush1.bf16.msra.mxu0 0
        %1647 = vmatprep.mubr.bf16.mxu0 0
        %1648 = vmatmul.mubr.bf16.gmra.mrb[0].mxu0 %v1610
        %v1649 = vpop.f32.mrb[0].mxu0
        %v1650 = vadd.f32 %v1604, %v1649
        %v1651 = vpop.f32.mrb[0].mxu0
        %v1652 = vpop.f32.mrb[0].mxu0
        %v1653 = vpop.f32.mrb[0].mxu0
        %1654 = vdwg.mxu0
        %s1655 = scalar_lea.vmem %s7, 8
        %v1656 = vld [vmem:[%s1655] sm:$0xf]
        %v1658 = vsel %vm1126, %v1558, 0
        %v1661 = vsel %vm1374, %v1656, 0
        %1663 = vmatprep.subr.bf16.mxu0 0
        %1664 = vmatpush1.bf16.msra.mxu0 %v1661
        %1665 = vmatprep.subr.bf16.mxu0 0
        %1666 = vmatpush1.bf16.msra.mxu0 0
        %1667 = vmatprep.subr.bf16.mxu0 0
        %1668 = vmatpush1.bf16.msra.mxu0 0
        %1669 = vmatprep.subr.bf16.mxu0 0
        %1670 = vmatpush1.bf16.msra.mxu0 0
        %1671 = vmatprep.subr.bf16.mxu0 0
        %1672 = vmatpush1.bf16.msra.mxu0 0
        %1673 = vmatprep.subr.bf16.mxu0 0
        %1674 = vmatpush1.bf16.msra.mxu0 0
        %1675 = vmatprep.subr.bf16.mxu0 0
        %1676 = vmatpush1.bf16.msra.mxu0 0
        %1677 = vmatprep.subr.bf16.mxu0 0
        %1678 = vmatpush1.bf16.msra.mxu0 0
        %1679 = vmatprep.subr.bf16.mxu0 0
        %1680 = vmatpush1.bf16.msra.mxu0 0
        %1681 = vmatprep.subr.bf16.mxu0 0
        %1682 = vmatpush1.bf16.msra.mxu0 0
        %1683 = vmatprep.subr.bf16.mxu0 0
        %1684 = vmatpush1.bf16.msra.mxu0 0
        %1685 = vmatprep.subr.bf16.mxu0 0
        %1686 = vmatpush1.bf16.msra.mxu0 0
        %1687 = vmatprep.subr.bf16.mxu0 0
        %1688 = vmatpush1.bf16.msra.mxu0 0
        %1689 = vmatprep.subr.bf16.mxu0 0
        %1690 = vmatpush1.bf16.msra.mxu0 0
        %1691 = vmatprep.subr.bf16.mxu0 0
        %1692 = vmatpush1.bf16.msra.mxu0 0
        %1693 = vmatprep.subr.bf16.mxu0 0
        %1694 = vmatpush1.bf16.msra.mxu0 0
        %1695 = vmatprep.mubr.bf16.mxu0 0
        %1696 = vmatmul.mubr.bf16.gmra.mrb[0].mxu0 %v1658
        %v1697 = vpop.f32.mrb[0].mxu0
        %v1698 = vadd.f32 0.0, %v1697
        %v1699 = vpop.f32.mrb[0].mxu0
        %v1700 = vpop.f32.mrb[0].mxu0
        %v1701 = vpop.f32.mrb[0].mxu0
        %1702 = vdwg.mxu0
        %v1703 = vadd.f32 %v1650, %v1698
        %s1704 = scalar_lea.vmem %s7, 12
        %v1705 = vld [vmem:[%s1704] sm:$0xf]
        %v1707 = vsel %vm1126, %v1559, 0
        %v1710 = vsel %vm1374, %v1705, 0
        %1712 = vmatprep.subr.bf16.mxu0 0
        %1713 = vmatpush1.bf16.msra.mxu0 %v1710
        %1714 = vmatprep.subr.bf16.mxu0 0
        %1715 = vmatpush1.bf16.msra.mxu0 0
        %1716 = vmatprep.subr.bf16.mxu0 0
        %1717 = vmatpush1.bf16.msra.mxu0 0
        %1718 = vmatprep.subr.bf16.mxu0 0
        %1719 = vmatpush1.bf16.msra.mxu0 0
        %1720 = vmatprep.subr.bf16.mxu0 0
        %1721 = vmatpush1.bf16.msra.mxu0 0
        %1722 = vmatprep.subr.bf16.mxu0 0
        %1723 = vmatpush1.bf16.msra.mxu0 0
        %1724 = vmatprep.subr.bf16.mxu0 0
        %1725 = vmatpush1.bf16.msra.mxu0 0
        %1726 = vmatprep.subr.bf16.mxu0 0
        %1727 = vmatpush1.bf16.msra.mxu0 0
        %1728 = vmatprep.subr.bf16.mxu0 0
        %1729 = vmatpush1.bf16.msra.mxu0 0
        %1730 = vmatprep.subr.bf16.mxu0 0
        %1731 = vmatpush1.bf16.msra.mxu0 0
        %1732 = vmatprep.subr.bf16.mxu0 0
        %1733 = vmatpush1.bf16.msra.mxu0 0
        %1734 = vmatprep.subr.bf16.mxu0 0
        %1735 = vmatpush1.bf16.msra.mxu0 0
        %1736 = vmatprep.subr.bf16.mxu0 0
        %1737 = vmatpush1.bf16.msra.mxu0 0
        %1738 = vmatprep.subr.bf16.mxu0 0
        %1739 = vmatpush1.bf16.msra.mxu0 0
        %1740 = vmatprep.subr.bf16.mxu0 0
        %1741 = vmatpush1.bf16.msra.mxu0 0
        %1742 = vmatprep.subr.bf16.mxu0 0
        %1743 = vmatpush1.bf16.msra.mxu0 0
        %1744 = vmatprep.mubr.bf16.mxu0 0
        %1745 = vmatmul.mubr.bf16.gmra.mrb[0].mxu0 %v1707
        %v1746 = vpop.f32.mrb[0].mxu0
        %v1747 = vadd.f32 0.0, %v1746
        %v1748 = vpop.f32.mrb[0].mxu0
        %v1749 = vpop.f32.mrb[0].mxu0
        %v1750 = vpop.f32.mrb[0].mxu0
        %1751 = vdwg.mxu0
        %v1752 = vadd.f32 %v1703, %v1747
        %1753 = vst.msk [vmem:[%s357] sm:$0xff] %vm885, %v1752
        %s1754 = sand.u32 %s234, 1
        %s1755 = scalar_lea.sflag [#allocation6], %s1754
        %s1756 = sand.u32 %s234, 1
        %s1757 = smul.addr %s1756, 8
        %s1758 = scalar_lea.vmem [#allocation5], %s1757
        // Predicated region
        $region57: #{tpu_custom_call.1} parent=51 // pred_check
          %p1759 = pneg %p244
        $region58: #{tpu_custom_call.1} parent=51 // pred_check_branch
          %1761 = sbr.rel (%p1759) target = $region60
        $region59: #{tpu_custom_call.1} parent=51 // pred_region
          %s1763 = ssub.s32 128, 128
          %1764 = vsyncadd %s1755, %s1763
          %s1765 = sadd.s32 %s27, %s26
          %s1766 = smul.addr %s1765, 128
          %s1767 = scalar_lea.hbm %s8, %s1766
          %s1769 = sshll.u32 %s1758, 4
          %s1770 = int_to_ptr.vmem [resolvable:$true] %s1769
          %1772 = dma.vmem_to_hbm [thread:$0]  %s1770, 128, %s1767, %s1755
        $region60: #{tpu_custom_call.1} parent=51 // pred_fallthru
          _
      $region52: #{tpu_custom_call.1} parent=5 // pred_fallthru
        _
      %p1773 = scmp.le.s32.totalorder 2, %s17
      // Predicated region
      $region61: #{tpu_custom_call.1} parent=5 // pred_check
        %p1774 = pneg %p1773
      $region62: #{tpu_custom_call.1} parent=5 // pred_check_branch
        %1776 = sbr.rel (%p1774) target = $region64
      $region63: #{tpu_custom_call.1} parent=5 // pred_region
        %s1777 = ssub.s32 %s17, 2
        // Predicated region
        $region65: #{tpu_custom_call.1} parent=63 // pred_check
          %p1778 = pneg %p250
        $region66: #{tpu_custom_call.1} parent=63 // pred_check_branch
          %1780 = sbr.rel (%p1778) target = $region68
        $region67: #{tpu_custom_call.1} parent=63 // pred_region
          %s1781 = sand.u32 %s235, 1
          %s1782 = scalar_lea.sflag [#allocation6], %s1781
          %s1783 = sand.u32 %s235, 1
          %s1784 = smul.addr %s1783, 8
          %s1785 = scalar_lea.vmem [#allocation5], %s1784
          %1786 = dma.done %s1782, 128
        $region68: #{tpu_custom_call.1} parent=63 // pred_fallthru
          _
      $region64: #{tpu_custom_call.1} parent=5 // pred_fallthru
        _
    $region6: #{tpu_custom_call.1} parent=1 // loop_footer
      %s21 = sadd.s32 1, %s17
    $region7: #{tpu_custom_call.1} parent=1 // loop_footer_branch
      %16 = sbr.rel target = $region3
    $region8: #{tpu_custom_call.1} parent=1 // loop_exit
      _
    %1787 = vsyncpa [#allocation6], 1
    %s1788 = scalar_lea.sflag [#allocation6], 1
    %1789 = vsyncpa %s1788, 1

</llo_original>
